<compile_context>
chip_gen: v7x
topology: tpu7x:2x2x1
jax: 0.10.0
libtpu: 0.0.40
codegen_flags: <defaults>
</compile_context>

<pallas_src>
import functools
import math

import jax
import jax.numpy as jnp
import numpy as np
from jax.experimental import pallas as pl
from jax.experimental.pallas import tpu as pltpu


# ----------------------------------------------------------------------------
# deterministic "parameter" construction (mirrors SIFTDescriptor.__init__)
# ----------------------------------------------------------------------------
def _gaussian_1d(ks: int, sigma: float) -> np.ndarray:
    x = np.arange(ks, dtype=np.float64) - ks // 2
    if ks % 2 == 0:
        x = x + 0.5
    g = np.exp(-(x * x) / (2.0 * sigma * sigma))
    return g / g.sum()


def _bin_ksize_stride_pad(patch_size: int, nsb: int):
    ksize = 2 * int(patch_size / (nsb + 1))
    stride = patch_size // nsb
    pad = ksize // 4
    out = (patch_size + 2 * pad - ksize) // stride + 1
    assert out == nsb, "patch_size incompatible with num_spatial_bins"
    return ksize, stride, pad


def _sift_pooling_1d(ksize: int) -> np.ndarray:
    ks_2 = ksize / 2.0
    xc2 = ks_2 - np.abs(np.arange(ksize, dtype=np.float64) + 0.5 - ks_2)
    return xc2 / ks_2  # kernel2d = outer(xc2, xc2) / ks_2**2 = outer(k1, k1)


def _grad_matrices(ps: int):
    """gx = x_flat @ Dx, gy = x_flat @ Dy  (central diff / 2, replicate pad)."""
    L = ps * ps
    dx = np.zeros((L, L), np.float64)
    dy = np.zeros((L, L), np.float64)
    for p in range(ps):
        for q in range(ps):
            j = p * ps + q
            dx[p * ps + min(q + 1, ps - 1), j] += 0.5
            dx[p * ps + max(q - 1, 0), j] -= 0.5
            dy[min(p + 1, ps - 1) * ps + q, j] += 0.5
            dy[max(p - 1, 0) * ps + q, j] -= 0.5
    return dx, dy


def _pool_matrix(ps: int, nsb: int) -> np.ndarray:
    """W[p*ps+q, y*nsb+x] so that conv2d(pk, stride, pad) == m_flat @ W."""
    ksize, stride, pad = _bin_ksize_stride_pad(ps, nsb)
    k1 = _sift_pooling_1d(ksize)
    P = np.zeros((nsb, ps), np.float64)
    for b in range(nsb):
        for p in range(ps):
            u = p - b * stride + pad
            if 0 <= u < ksize:
                P[b, p] = k1[u]
    L = ps * ps
    W = np.zeros((L, nsb * nsb), np.float64)
    for y in range(nsb):
        for x in range(nsb):
            W[:, y * nsb + x] = np.outer(P[y], P[x]).reshape(-1)
    return W


def _extract_patches(img: jnp.ndarray, ps: int) -> jnp.ndarray:
    """torch .unfold(-2,ps,ps).unfold(-2,ps,ps).reshape(-1,1,ps,ps), flattened."""
    # TODO(synk): fold this reshape/transpose into the kernel's index_map to save
    # one extra HBM read+write pass over both images (low priority: compute-bound).
    B, C, H, W = img.shape
    nH, nW = H // ps, W // ps
    x = img.reshape(B, C, nH, ps, nW, ps)
    x = jnp.transpose(x, (0, 1, 2, 4, 3, 5))  # (B, C, nH, nW, ps, ps)
    return x.reshape(B * C * nH * nW, ps * ps)


def _round_up(x: int, m: int) -> int:
    return ((x + m - 1) // m) * m


def _detect_num_cores() -> int:
    """Manual 2-way core split only pays on v7x (2 TensorCores/chip)."""
    try:
        kind = jax.devices()[0].device_kind.lower()
    except Exception:
        return 1
    return 2 if "v7" in kind else 1


def _vmem_limit_bytes(tile_n: int, L: int, desc_dim: int, num_ang_bins: int) -> int:
    """Footprint-based scoped-VMEM limit (generous bound, clamped for v7x)."""
    two_t = 2 * tile_n
    inputs = 2 * (2 * tile_n * L * 2)                             # bf16 tiles, 2 bufs
    weights = 2 * 2 * (L * 2 * L + num_ang_bins * L * desc_dim)   # bf16 consts, 2 bufs
    temps = 28 * two_t * L * 4                                    # f32 elementwise temps
    desc_tmp = 6 * two_t * desc_dim * 4                           # descriptor-sized temps
    total = inputs + weights + temps + desc_tmp + (4 << 20)
    # >= 16 MiB for tiny shapes, <= 56 MiB so it always fits v7x's 64 MiB physical.
    return int(min(max(total, 16 << 20), 56 << 20))


# ----------------------------------------------------------------------------
# Pallas kernel: per-tile descriptors for both images + lane-dense SSE accum.
# ----------------------------------------------------------------------------
def _sift_loss_kernel(p_ref, dxy_ref, wbig_ref, o_ref, *,
                      num_ang_bins, clipval, use_rsq_grads, rootsift, eps):
    t = p_ref.shape[1]           # patches per image per tile
    L = p_ref.shape[2]           # ps*ps
    desc_dim = o_ref.shape[2]
    two_pi = 2.0 * math.pi
    nb = float(num_ang_bins)

    step = pl.program_id(1)

    @pl.when(step == 0)
    def _():
        o_ref[...] = jnp.zeros_like(o_ref)

    # (2, t, L) -> (2t, L): leading-dim merge is layout-free.  Rows [0, t) are
    # image 1's patches, rows [t, 2t) are image 2's.
    x = p_ref[...].reshape(2 * t, L)                                    # bf16

    # spatial_gradient(input, 'diff'): [gx | gy] in ONE bf16 MXU matmul with f32
    # accumulation (replicate padding baked into the weight matrix).
    g = jnp.dot(x, dxy_ref[...], preferred_element_type=jnp.float32)    # (2t, 2L) f32
    gx = g[:, :L]
    gy = g[:, L:]
    if use_rsq_grads:
        gx = jnp.abs(gx)          # == sqrt(gx**2) forward; VPU bit-op, not EUP sqrt
        gy = jnp.abs(gy)
    mag = jnp.sqrt(gx * gx + gy * gy + eps)
    ori = jnp.arctan2(gy, gx + eps) + two_pi
    # NOTE: the Gaussian window gk is folded into wbig's rows (exact algebra),
    # so there is no `mag * gk` multiply here.

    o_big = nb * ori / two_pi
    bo0f = jnp.floor(o_big)
    wo1 = o_big - bo0f
    # ori in (pi, 3pi]  =>  bo0f in [nb/2, 3nb/2]: a conditional subtract is an
    # exact replacement for the modulo (no divide/floor round-trip).
    bo0 = jnp.where(bo0f >= nb, bo0f - nb, bo0f)
    bo1t = bo0 + 1.0
    bo1 = jnp.where(bo1t >= nb, bo1t - nb, bo1t)
    wo0m = (1.0 - wo1) * mag
    wo1m = wo1 * mag

    # Soft-assign magnitudes to their two angle bins and pool each bin with a
    # block-row matmul against the (gk-scaled, block-diagonal) pooling weights,
    # accumulating straight into a lane-dense (2t, desc_dim) f32 descriptor.
    # No (2t, nb*L) stacked tensor is ever materialized (same MXU pass count).
    # TODO(synk): a roll-based gradient (dxy has 2 nonzeros/col) could replace
    # the first matmul on v5e if a bundle dump shows MXU is still binding.
    desc = None
    for i in range(num_ang_bins):
        fi = float(i)
        m_i = jnp.where(bo0 == fi, wo0m, 0.0) + jnp.where(bo1 == fi, wo1m, 0.0)
        d_i = jnp.dot(m_i.astype(jnp.bfloat16),
                      wbig_ref[i * L:(i + 1) * L, :],
                      preferred_element_type=jnp.float32)
        desc = d_i if desc is None else desc + d_i

    def l2_normalize(d):
        ss = jnp.sum(d * d, axis=1, keepdims=True)
        return d / jnp.maximum(jnp.sqrt(ss), 1e-12)       # F.normalize eps

    desc = l2_normalize(desc)
    desc = jnp.clip(desc, 0.0, clipval)
    desc = l2_normalize(desc)
    if rootsift:
        s1 = jnp.sum(jnp.abs(desc), axis=1, keepdims=True)
        desc = jnp.sqrt(desc / jnp.maximum(s1, 1e-12) + eps)

    # Partial SSE for this tile, kept lane-dense: reduce rows in sublane groups
    # of 8 (pure VPU adds); the single 128-lane reduction happens in the wrapper.
    diff = desc[:t] - desc[t:]
    sq = diff * diff
    partial = jnp.sum(sq.reshape(t // 8, 8, desc_dim), axis=0)          # (8, desc_dim)
    o_ref[...] += partial[None, :, :]


# ----------------------------------------------------------------------------
# wrapper: patch extraction + constants + gridded pallas_call
# ----------------------------------------------------------------------------
def sif_descriptor_loss(img_1, img_2, *, patch_size=16, num_ang_bins=8,
                        num_spatial_bins=4, use_rsq_grads=True,
                        rootsift=True, clipval=0.2,
                        tile_n=512, num_cores=None):
    ps = patch_size
    eps = 1e-10
    L = ps * ps
    nsb2 = num_spatial_bins * num_spatial_bins
    desc_dim = num_ang_bins * nsb2

    if num_cores is None:
        num_cores = _detect_num_cores()

    p1 = _extract_patches(img_1, ps)          # (N, L)
    p2 = _extract_patches(img_2, ps)
    n = p1.shape[0]

    # ---- tiling over the patch dimension -----------------------------------
    tile_n = max(8, min(int(tile_n), _round_up(pl.cdiv(n, num_cores), 8)))
    tile_n = _round_up(tile_n, 8)
    total_tiles = pl.cdiv(n, tile_n)
    tiles_per_core = pl.cdiv(total_tiles, num_cores)
    n_pad = num_cores * tiles_per_core * tile_n

    # Stack both images into ONE HBM array -> single BlockSpec / DMA stream and
    # no in-kernel concatenate; bf16 halves input traffic (matmuls are bf16).
    p = jnp.stack([p1, p2], axis=0)                          # (2, N, L)
    if n_pad != n:
        # Identical zero padding in both images -> identical descriptors ->
        # exactly zero contribution to the SSE; mean divisor stays N*desc_dim.
        p = jnp.pad(p, ((0, 0), (0, n_pad - n), (0, 0)))
    p = p.astype(jnp.bfloat16)

    # ---- constant weight matrices (built once in numpy, stored bf16) --------
    sigma = float(ps) / math.sqrt(2.0)
    g1 = _gaussian_1d(ps, sigma)
    gk_flat = np.outer(g1, g1).reshape(L)                    # sums to 1
    dx, dy = _grad_matrices(ps)
    dxy = np.concatenate([dx, dy], axis=1)                   # (L, 2L)
    w_pool = _pool_matrix(ps, num_spatial_bins)              # (L, nsb^2)
    w_pool_gk = gk_flat[:, None] * w_pool                    # Gaussian window folded in
    w_big = np.zeros((num_ang_bins * L, desc_dim), np.float64)
    for i in range(num_ang_bins):
        w_big[i * L:(i + 1) * L, i * nsb2:(i + 1) * nsb2] = w_pool_gk

    dxy = jnp.asarray(dxy, jnp.bfloat16)
    w_big = jnp.asarray(w_big, jnp.bfloat16)

    kernel = functools.partial(
        _sift_loss_kernel,
        num_ang_bins=num_ang_bins,
        clipval=float(clipval),
        use_rsq_grads=use_rsq_grads,
        rootsift=rootsift,
        eps=eps,
    )

    patch_spec = pl.BlockSpec((2, tile_n, L),
                              lambda c, i: (0, c * tiles_per_core + i, 0))
    dxy_spec = pl.BlockSpec((L, 2 * L), lambda c, i: (0, 0))        # VMEM-resident
    wbig_spec = pl.BlockSpec((num_ang_bins * L, desc_dim), lambda c, i: (0, 0))

    partial_sse = pl.pallas_call(
        kernel,
        out_shape=jax.ShapeDtypeStruct((num_cores, 8, desc_dim), jnp.float32),
        grid_spec=pltpu.PrefetchScalarGridSpec(
            num_scalar_prefetch=0,
            grid=(num_cores, tiles_per_core),
            in_specs=[patch_spec, dxy_spec, wbig_spec],
            out_specs=pl.BlockSpec((1, 8, desc_dim), lambda c, i: (c, 0, 0)),
        ),
        compiler_params=pltpu.CompilerParams(
            dimension_semantics=("parallel", "arbitrary"),
            vmem_limit_bytes=_vmem_limit_bytes(tile_n, L, desc_dim, num_ang_bins),
        ),
    )(p, dxy, w_big)

    # F.mse_loss (mean) over all descriptors; single cross-lane reduction here.
    return jnp.sum(partial_sse) / float(n * desc_dim)


if __name__ == "__main__":
    # Small-shape demo: scaled-down SIFDescriptorLoss (patch_size=16,
    # num_ang_bins=8, num_spatial_bins=4) on 2x1x48x48 images -> 18 patches,
    # 128-D descriptors.  tile_n=8 exercises multi-tile accumulation + padding.
    key = jax.random.PRNGKey(0)
    k1, k2 = jax.random.split(key)
    B, C, H, W = 2, 1, 48, 48
    img_1 = jax.random.uniform(k1, (B, C, H, W), dtype=jnp.float32)
    img_2 = jax.random.uniform(k2, (B, C, H, W), dtype=jnp.float32)

    loss = sif_descriptor_loss(
        img_1, img_2,
        patch_size=16, num_ang_bins=8, num_spatial_bins=4,
        use_rsq_grads=True, rootsift=True, clipval=0.2,
        tile_n=8,
    )
    loss = jax.block_until_ready(loss)
    assert jnp.isfinite(loss)
    print("KERNEL_OK")
</pallas_src>

<mosaic_0001>
module attributes {stable_mosaic.version = 11 : i64} {
  func.func @_sift_loss_kernel(%arg0: i32, %arg1: i32, %arg2: memref<2x8x256xbf16, #tpu.memory_space<vmem>>, %arg3: memref<256x512xbf16, #tpu.memory_space<vmem>>, %arg4: memref<2048x128xbf16, #tpu.memory_space<vmem>>, %arg5: memref<1x8x128xf32, #tpu.memory_space<vmem>>) attributes {dimension_semantics = [#tpu.dimension_semantics<parallel>, #tpu.dimension_semantics<arbitrary>], iteration_bounds = array<i64: 1, 3>, scalar_prefetch = 0 : i64, scratch_operands = 0 : i64, tpu.core_type = #tpu.core_type<tc>, window_params = [{transform_indices = @transform_0, window_bounds = array<i64: 2, 8, 256>}, {pipeline_mode = #tpu.pipeline_mode<synchronous>, transform_indices = @transform_1, window_bounds = array<i64: 256, 512>}, {pipeline_mode = #tpu.pipeline_mode<synchronous>, transform_indices = @transform_2, window_bounds = array<i64: 2048, 128>}, {transform_indices = @transform_3, window_bounds = array<i64: 1, 8, 128>}]} {
    %c0_i32 = arith.constant 0 : i32
    %0 = arith.cmpi eq, %arg1, %c0_i32 : i32
    %1 = arith.extui %0 : i1 to i32
    %c0_i32_0 = arith.constant 0 : i32
    %2 = arith.cmpi ne, %1, %c0_i32_0 : i32
    scf.if %2 {
      %cst_81 = arith.constant 0.000000e+00 : f32
      %187 = vector.broadcast %cst_81 : f32 to vector<1x8x128xf32>
      %c0_82 = arith.constant 0 : index
      %c0_83 = arith.constant 0 : index
      %c0_84 = arith.constant 0 : index
      %188 = vector.load %arg5[%c0_82, %c0_83, %c0_84] : memref<1x8x128xf32, #tpu.memory_space<vmem>>, vector<1x8x128xf32>
      tpu.vector_store %arg5[%c0_82, %c0_83, %c0_84], %187 {strides = array<i32>} : memref<1x8x128xf32, #tpu.memory_space<vmem>>, vector<1x8x128xf32>,
    } else {
    }
    %c0 = arith.constant 0 : index
    %c0_1 = arith.constant 0 : index
    %c0_2 = arith.constant 0 : index
    %3 = vector.load %arg2[%c0, %c0_1, %c0_2] : memref<2x8x256xbf16, #tpu.memory_space<vmem>>, vector<2x8x256xbf16>
    %4 = vector.shape_cast %3 : vector<2x8x256xbf16> to vector<16x256xbf16>
    %c0_3 = arith.constant 0 : index
    %c0_4 = arith.constant 0 : index
    %5 = vector.load %arg3[%c0_3, %c0_4] : memref<256x512xbf16, #tpu.memory_space<vmem>>, vector<256x512xbf16>
    %cst = arith.constant dense<0.000000e+00> : vector<16x512xf32>
    %6 = tpu.matmul %4, %5, %cst {dimension_numbers = #tpu.dot_dimension_numbers<[1], [0], [0], [1], [0, 0, 1, 1], [], []>} : vector<16x256xbf16>, vector<256x512xbf16>, vector<16x512xf32> -> vector<16x512xf32>
    %7 = vector.extract_strided_slice %6 {offsets = [0, 0], sizes = [16, 256], strides = [1, 1]} : vector<16x512xf32> to vector<16x256xf32>
    %8 = vector.extract_strided_slice %6 {offsets = [0, 256], sizes = [16, 256], strides = [1, 1]} : vector<16x512xf32> to vector<16x256xf32>
    %9 = math.absf %7 : vector<16x256xf32>
    %10 = math.absf %8 : vector<16x256xf32>
    %11 = arith.mulf %9, %9 : vector<16x256xf32>
    %12 = arith.mulf %10, %10 : vector<16x256xf32>
    %13 = arith.addf %11, %12 : vector<16x256xf32>
    %cst_5 = arith.constant 1.000000e-10 : f32
    %14 = vector.broadcast %cst_5 : f32 to vector<16x256xf32>
    %15 = arith.addf %13, %14 : vector<16x256xf32>
    %16 = math.sqrt %15 : vector<16x256xf32>
    %cst_6 = arith.constant 1.000000e-10 : f32
    %17 = vector.broadcast %cst_6 : f32 to vector<16x256xf32>
    %18 = arith.addf %9, %17 : vector<16x256xf32>
    %19 = math.atan2 %10, %18 : vector<16x256xf32>
    %cst_7 = arith.constant 6.28318548 : f32
    %20 = vector.broadcast %cst_7 : f32 to vector<16x256xf32>
    %21 = arith.addf %19, %20 : vector<16x256xf32>
    %cst_8 = arith.constant 8.000000e+00 : f32
    %22 = vector.broadcast %cst_8 : f32 to vector<16x256xf32>
    %23 = arith.mulf %22, %21 : vector<16x256xf32>
    %cst_9 = arith.constant 6.28318548 : f32
    %24 = vector.broadcast %cst_9 : f32 to vector<16x256xf32>
    %25 = arith.divf %23, %24 : vector<16x256xf32>
    %26 = math.floor %25 : vector<16x256xf32>
    %27 = arith.subf %25, %26 : vector<16x256xf32>
    %cst_10 = arith.constant 8.000000e+00 : f32
    %28 = vector.broadcast %cst_10 : f32 to vector<16x256xf32>
    %29 = arith.cmpf oge, %26, %28 : vector<16x256xf32>
    %cst_11 = arith.constant 8.000000e+00 : f32
    %30 = vector.broadcast %cst_11 : f32 to vector<16x256xf32>
    %31 = arith.subf %26, %30 : vector<16x256xf32>
    %32 = arith.select %29, %31, %26 : vector<16x256xi1>, vector<16x256xf32>
    %cst_12 = arith.constant 1.000000e+00 : f32
    %33 = vector.broadcast %cst_12 : f32 to vector<16x256xf32>
    %34 = arith.addf %32, %33 : vector<16x256xf32>
    %cst_13 = arith.constant 8.000000e+00 : f32
    %35 = vector.broadcast %cst_13 : f32 to vector<16x256xf32>
    %36 = arith.cmpf oge, %34, %35 : vector<16x256xf32>
    %cst_14 = arith.constant 8.000000e+00 : f32
    %37 = vector.broadcast %cst_14 : f32 to vector<16x256xf32>
    %38 = arith.subf %34, %37 : vector<16x256xf32>
    %39 = arith.select %36, %38, %34 : vector<16x256xi1>, vector<16x256xf32>
    %cst_15 = arith.constant 1.000000e+00 : f32
    %40 = vector.broadcast %cst_15 : f32 to vector<16x256xf32>
    %41 = arith.subf %40, %27 : vector<16x256xf32>
    %42 = arith.mulf %41, %16 : vector<16x256xf32>
    %43 = arith.mulf %27, %16 : vector<16x256xf32>
    %cst_16 = arith.constant 0.000000e+00 : f32
    %44 = vector.broadcast %cst_16 : f32 to vector<16x256xf32>
    %45 = arith.cmpf oeq, %32, %44 : vector<16x256xf32>
    %cst_17 = arith.constant 0.000000e+00 : f32
    %46 = vector.broadcast %cst_17 : f32 to vector<16x256xf32>
    %47 = arith.select %45, %42, %46 : vector<16x256xi1>, vector<16x256xf32>
    %cst_18 = arith.constant 0.000000e+00 : f32
    %48 = vector.broadcast %cst_18 : f32 to vector<16x256xf32>
    %49 = arith.cmpf oeq, %39, %48 : vector<16x256xf32>
    %cst_19 = arith.constant 0.000000e+00 : f32
    %50 = vector.broadcast %cst_19 : f32 to vector<16x256xf32>
    %51 = arith.select %49, %43, %50 : vector<16x256xi1>, vector<16x256xf32>
    %52 = arith.addf %47, %51 : vector<16x256xf32>
    %53 = arith.truncf %52 : vector<16x256xf32> to vector<16x256xbf16>
    %c0_20 = arith.constant 0 : index
    %c0_21 = arith.constant 0 : index
    %54 = vector.load %arg4[%c0_20, %c0_21] : memref<2048x128xbf16, #tpu.memory_space<vmem>>, vector<256x128xbf16>
    %cst_22 = arith.constant dense<0.000000e+00> : vector<16x128xf32>
    %55 = tpu.matmul %53, %54, %cst_22 {dimension_numbers = #tpu.dot_dimension_numbers<[1], [0], [0], [1], [0, 0, 1, 1], [], []>} : vector<16x256xbf16>, vector<256x128xbf16>, vector<16x128xf32> -> vector<16x128xf32>
    %cst_23 = arith.constant 1.000000e+00 : f32
    %56 = vector.broadcast %cst_23 : f32 to vector<16x256xf32>
    %57 = arith.cmpf oeq, %32, %56 : vector<16x256xf32>
    %cst_24 = arith.constant 0.000000e+00 : f32
    %58 = vector.broadcast %cst_24 : f32 to vector<16x256xf32>
    %59 = arith.select %57, %42, %58 : vector<16x256xi1>, vector<16x256xf32>
    %cst_25 = arith.constant 1.000000e+00 : f32
    %60 = vector.broadcast %cst_25 : f32 to vector<16x256xf32>
    %61 = arith.cmpf oeq, %39, %60 : vector<16x256xf32>
    %cst_26 = arith.constant 0.000000e+00 : f32
    %62 = vector.broadcast %cst_26 : f32 to vector<16x256xf32>
    %63 = arith.select %61, %43, %62 : vector<16x256xi1>, vector<16x256xf32>
    %64 = arith.addf %59, %63 : vector<16x256xf32>
    %65 = arith.truncf %64 : vector<16x256xf32> to vector<16x256xbf16>
    %c256 = arith.constant 256 : index
    %c0_27 = arith.constant 0 : index
    %66 = vector.load %arg4[%c256, %c0_27] : memref<2048x128xbf16, #tpu.memory_space<vmem>>, vector<256x128xbf16>
    %cst_28 = arith.constant dense<0.000000e+00> : vector<16x128xf32>
    %67 = tpu.matmul %65, %66, %cst_28 {dimension_numbers = #tpu.dot_dimension_numbers<[1], [0], [0], [1], [0, 0, 1, 1], [], []>} : vector<16x256xbf16>, vector<256x128xbf16>, vector<16x128xf32> -> vector<16x128xf32>
    %68 = arith.addf %55, %67 : vector<16x128xf32>
    %cst_29 = arith.constant 2.000000e+00 : f32
    %69 = vector.broadcast %cst_29 : f32 to vector<16x256xf32>
    %70 = arith.cmpf oeq, %32, %69 : vector<16x256xf32>
    %cst_30 = arith.constant 0.000000e+00 : f32
    %71 = vector.broadcast %cst_30 : f32 to vector<16x256xf32>
    %72 = arith.select %70, %42, %71 : vector<16x256xi1>, vector<16x256xf32>
    %cst_31 = arith.constant 2.000000e+00 : f32
    %73 = vector.broadcast %cst_31 : f32 to vector<16x256xf32>
    %74 = arith.cmpf oeq, %39, %73 : vector<16x256xf32>
    %cst_32 = arith.constant 0.000000e+00 : f32
    %75 = vector.broadcast %cst_32 : f32 to vector<16x256xf32>
    %76 = arith.select %74, %43, %75 : vector<16x256xi1>, vector<16x256xf32>
    %77 = arith.addf %72, %76 : vector<16x256xf32>
    %78 = arith.truncf %77 : vector<16x256xf32> to vector<16x256xbf16>
    %c512 = arith.constant 512 : index
    %c0_33 = arith.constant 0 : index
    %79 = vector.load %arg4[%c512, %c0_33] : memref<2048x128xbf16, #tpu.memory_space<vmem>>, vector<256x128xbf16>
    %cst_34 = arith.constant dense<0.000000e+00> : vector<16x128xf32>
    %80 = tpu.matmul %78, %79, %cst_34 {dimension_numbers = #tpu.dot_dimension_numbers<[1], [0], [0], [1], [0, 0, 1, 1], [], []>} : vector<16x256xbf16>, vector<256x128xbf16>, vector<16x128xf32> -> vector<16x128xf32>
    %81 = arith.addf %68, %80 : vector<16x128xf32>
    %cst_35 = arith.constant 3.000000e+00 : f32
    %82 = vector.broadcast %cst_35 : f32 to vector<16x256xf32>
    %83 = arith.cmpf oeq, %32, %82 : vector<16x256xf32>
    %cst_36 = arith.constant 0.000000e+00 : f32
    %84 = vector.broadcast %cst_36 : f32 to vector<16x256xf32>
    %85 = arith.select %83, %42, %84 : vector<16x256xi1>, vector<16x256xf32>
    %cst_37 = arith.constant 3.000000e+00 : f32
    %86 = vector.broadcast %cst_37 : f32 to vector<16x256xf32>
    %87 = arith.cmpf oeq, %39, %86 : vector<16x256xf32>
    %cst_38 = arith.constant 0.000000e+00 : f32
    %88 = vector.broadcast %cst_38 : f32 to vector<16x256xf32>
    %89 = arith.select %87, %43, %88 : vector<16x256xi1>, vector<16x256xf32>
    %90 = arith.addf %85, %89 : vector<16x256xf32>
    %91 = arith.truncf %90 : vector<16x256xf32> to vector<16x256xbf16>
    %c768 = arith.constant 768 : index
    %c0_39 = arith.constant 0 : index
    %92 = vector.load %arg4[%c768, %c0_39] : memref<2048x128xbf16, #tpu.memory_space<vmem>>, vector<256x128xbf16>
    %cst_40 = arith.constant dense<0.000000e+00> : vector<16x128xf32>
    %93 = tpu.matmul %91, %92, %cst_40 {dimension_numbers = #tpu.dot_dimension_numbers<[1], [0], [0], [1], [0, 0, 1, 1], [], []>} : vector<16x256xbf16>, vector<256x128xbf16>, vector<16x128xf32> -> vector<16x128xf32>
    %94 = arith.addf %81, %93 : vector<16x128xf32>
    %cst_41 = arith.constant 4.000000e+00 : f32
    %95 = vector.broadcast %cst_41 : f32 to vector<16x256xf32>
    %96 = arith.cmpf oeq, %32, %95 : vector<16x256xf32>
    %cst_42 = arith.constant 0.000000e+00 : f32
    %97 = vector.broadcast %cst_42 : f32 to vector<16x256xf32>
    %98 = arith.select %96, %42, %97 : vector<16x256xi1>, vector<16x256xf32>
    %cst_43 = arith.constant 4.000000e+00 : f32
    %99 = vector.broadcast %cst_43 : f32 to vector<16x256xf32>
    %100 = arith.cmpf oeq, %39, %99 : vector<16x256xf32>
    %cst_44 = arith.constant 0.000000e+00 : f32
    %101 = vector.broadcast %cst_44 : f32 to vector<16x256xf32>
    %102 = arith.select %100, %43, %101 : vector<16x256xi1>, vector<16x256xf32>
    %103 = arith.addf %98, %102 : vector<16x256xf32>
    %104 = arith.truncf %103 : vector<16x256xf32> to vector<16x256xbf16>
    %c1024 = arith.constant 1024 : index
    %c0_45 = arith.constant 0 : index
    %105 = vector.load %arg4[%c1024, %c0_45] : memref<2048x128xbf16, #tpu.memory_space<vmem>>, vector<256x128xbf16>
    %cst_46 = arith.constant dense<0.000000e+00> : vector<16x128xf32>
    %106 = tpu.matmul %104, %105, %cst_46 {dimension_numbers = #tpu.dot_dimension_numbers<[1], [0], [0], [1], [0, 0, 1, 1], [], []>} : vector<16x256xbf16>, vector<256x128xbf16>, vector<16x128xf32> -> vector<16x128xf32>
    %107 = arith.addf %94, %106 : vector<16x128xf32>
    %cst_47 = arith.constant 5.000000e+00 : f32
    %108 = vector.broadcast %cst_47 : f32 to vector<16x256xf32>
    %109 = arith.cmpf oeq, %32, %108 : vector<16x256xf32>
    %cst_48 = arith.constant 0.000000e+00 : f32
    %110 = vector.broadcast %cst_48 : f32 to vector<16x256xf32>
    %111 = arith.select %109, %42, %110 : vector<16x256xi1>, vector<16x256xf32>
    %cst_49 = arith.constant 5.000000e+00 : f32
    %112 = vector.broadcast %cst_49 : f32 to vector<16x256xf32>
    %113 = arith.cmpf oeq, %39, %112 : vector<16x256xf32>
    %cst_50 = arith.constant 0.000000e+00 : f32
    %114 = vector.broadcast %cst_50 : f32 to vector<16x256xf32>
    %115 = arith.select %113, %43, %114 : vector<16x256xi1>, vector<16x256xf32>
    %116 = arith.addf %111, %115 : vector<16x256xf32>
    %117 = arith.truncf %116 : vector<16x256xf32> to vector<16x256xbf16>
    %c1280 = arith.constant 1280 : index
    %c0_51 = arith.constant 0 : index
    %118 = vector.load %arg4[%c1280, %c0_51] : memref<2048x128xbf16, #tpu.memory_space<vmem>>, vector<256x128xbf16>
    %cst_52 = arith.constant dense<0.000000e+00> : vector<16x128xf32>
    %119 = tpu.matmul %117, %118, %cst_52 {dimension_numbers = #tpu.dot_dimension_numbers<[1], [0], [0], [1], [0, 0, 1, 1], [], []>} : vector<16x256xbf16>, vector<256x128xbf16>, vector<16x128xf32> -> vector<16x128xf32>
    %120 = arith.addf %107, %119 : vector<16x128xf32>
    %cst_53 = arith.constant 6.000000e+00 : f32
    %121 = vector.broadcast %cst_53 : f32 to vector<16x256xf32>
    %122 = arith.cmpf oeq, %32, %121 : vector<16x256xf32>
    %cst_54 = arith.constant 0.000000e+00 : f32
    %123 = vector.broadcast %cst_54 : f32 to vector<16x256xf32>
    %124 = arith.select %122, %42, %123 : vector<16x256xi1>, vector<16x256xf32>
    %cst_55 = arith.constant 6.000000e+00 : f32
    %125 = vector.broadcast %cst_55 : f32 to vector<16x256xf32>
    %126 = arith.cmpf oeq, %39, %125 : vector<16x256xf32>
    %cst_56 = arith.constant 0.000000e+00 : f32
    %127 = vector.broadcast %cst_56 : f32 to vector<16x256xf32>
    %128 = arith.select %126, %43, %127 : vector<16x256xi1>, vector<16x256xf32>
    %129 = arith.addf %124, %128 : vector<16x256xf32>
    %130 = arith.truncf %129 : vector<16x256xf32> to vector<16x256xbf16>
    %c1536 = arith.constant 1536 : index
    %c0_57 = arith.constant 0 : index
    %131 = vector.load %arg4[%c1536, %c0_57] : memref<2048x128xbf16, #tpu.memory_space<vmem>>, vector<256x128xbf16>
    %cst_58 = arith.constant dense<0.000000e+00> : vector<16x128xf32>
    %132 = tpu.matmul %130, %131, %cst_58 {dimension_numbers = #tpu.dot_dimension_numbers<[1], [0], [0], [1], [0, 0, 1, 1], [], []>} : vector<16x256xbf16>, vector<256x128xbf16>, vector<16x128xf32> -> vector<16x128xf32>
    %133 = arith.addf %120, %132 : vector<16x128xf32>
    %cst_59 = arith.constant 7.000000e+00 : f32
    %134 = vector.broadcast %cst_59 : f32 to vector<16x256xf32>
    %135 = arith.cmpf oeq, %32, %134 : vector<16x256xf32>
    %cst_60 = arith.constant 0.000000e+00 : f32
    %136 = vector.broadcast %cst_60 : f32 to vector<16x256xf32>
    %137 = arith.select %135, %42, %136 : vector<16x256xi1>, vector<16x256xf32>
    %cst_61 = arith.constant 7.000000e+00 : f32
    %138 = vector.broadcast %cst_61 : f32 to vector<16x256xf32>
    %139 = arith.cmpf oeq, %39, %138 : vector<16x256xf32>
    %cst_62 = arith.constant 0.000000e+00 : f32
    %140 = vector.broadcast %cst_62 : f32 to vector<16x256xf32>
    %141 = arith.select %139, %43, %140 : vector<16x256xi1>, vector<16x256xf32>
    %142 = arith.addf %137, %141 : vector<16x256xf32>
    %143 = arith.truncf %142 : vector<16x256xf32> to vector<16x256xbf16>
    %c1792 = arith.constant 1792 : index
    %c0_63 = arith.constant 0 : index
    %144 = vector.load %arg4[%c1792, %c0_63] : memref<2048x128xbf16, #tpu.memory_space<vmem>>, vector<256x128xbf16>
    %cst_64 = arith.constant dense<0.000000e+00> : vector<16x128xf32>
    %145 = tpu.matmul %143, %144, %cst_64 {dimension_numbers = #tpu.dot_dimension_numbers<[1], [0], [0], [1], [0, 0, 1, 1], [], []>} : vector<16x256xbf16>, vector<256x128xbf16>, vector<16x128xf32> -> vector<16x128xf32>
    %146 = arith.addf %133, %145 : vector<16x128xf32>
    %147 = arith.mulf %146, %146 : vector<16x128xf32>
    %cst_65 = arith.constant dense<0.000000e+00> : vector<16xf32>
    %148 = vector.multi_reduction <add>, %147, %cst_65 [1] : vector<16x128xf32> to vector<16xf32>
    %149 = vector.shape_cast %148 : vector<16xf32> to vector<16x1xf32>
    %150 = math.sqrt %149 : vector<16x1xf32>
    %cst_66 = arith.constant 9.99999996E-13 : f32
    %151 = vector.broadcast %cst_66 : f32 to vector<16x1xf32>
    %152 = arith.maximumf %150, %151 : vector<16x1xf32>
    %153 = vector.broadcast %152 : vector<16x1xf32> to vector<16x128xf32>
    %154 = arith.divf %146, %153 : vector<16x128xf32>
    %cst_67 = arith.constant 0.000000e+00 : f32
    %cst_68 = arith.constant 2.000000e-01 : f32
    %155 = vector.broadcast %cst_67 : f32 to vector<16x128xf32>
    %156 = arith.maximumf %155, %154 : vector<16x128xf32>
    %157 = vector.broadcast %cst_68 : f32 to vector<16x128xf32>
    %158 = arith.minimumf %157, %156 : vector<16x128xf32>
    %159 = arith.mulf %158, %158 : vector<16x128xf32>
    %cst_69 = arith.constant dense<0.000000e+00> : vector<16xf32>
    %160 = vector.multi_reduction <add>, %159, %cst_69 [1] : vector<16x128xf32> to vector<16xf32>
    %161 = vector.shape_cast %160 : vector<16xf32> to vector<16x1xf32>
    %162 = math.sqrt %161 : vector<16x1xf32>
    %cst_70 = arith.constant 9.99999996E-13 : f32
    %163 = vector.broadcast %cst_70 : f32 to vector<16x1xf32>
    %164 = arith.maximumf %162, %163 : vector<16x1xf32>
    %165 = vector.broadcast %164 : vector<16x1xf32> to vector<16x128xf32>
    %166 = arith.divf %158, %165 : vector<16x128xf32>
    %167 = math.absf %166 : vector<16x128xf32>
    %cst_71 = arith.constant dense<0.000000e+00> : vector<16xf32>
    %168 = vector.multi_reduction <add>, %167, %cst_71 [1] : vector<16x128xf32> to vector<16xf32>
    %169 = vector.shape_cast %168 : vector<16xf32> to vector<16x1xf32>
    %cst_72 = arith.constant 9.99999996E-13 : f32
    %170 = vector.broadcast %cst_72 : f32 to vector<16x1xf32>
    %171 = arith.maximumf %169, %170 : vector<16x1xf32>
    %172 = vector.broadcast %171 : vector<16x1xf32> to vector<16x128xf32>
    %173 = arith.divf %166, %172 : vector<16x128xf32>
    %cst_73 = arith.constant 1.000000e-10 : f32
    %174 = vector.broadcast %cst_73 : f32 to vector<16x128xf32>
    %175 = arith.addf %173, %174 : vector<16x128xf32>
    %176 = math.sqrt %175 : vector<16x128xf32>
    %177 = vector.extract_strided_slice %176 {offsets = [0, 0], sizes = [8, 128], strides = [1, 1]} : vector<16x128xf32> to vector<8x128xf32>
    %178 = vector.extract_strided_slice %176 {offsets = [8, 0], sizes = [8, 128], strides = [1, 1]} : vector<16x128xf32> to vector<8x128xf32>
    %179 = arith.subf %177, %178 : vector<8x128xf32>
    %180 = arith.mulf %179, %179 : vector<8x128xf32>
    %181 = vector.shape_cast %180 : vector<8x128xf32> to vector<1x8x128xf32>
    %cst_74 = arith.constant dense<0.000000e+00> : vector<8x128xf32>
    %182 = vector.multi_reduction <add>, %181, %cst_74 [0] : vector<1x8x128xf32> to vector<8x128xf32>
    %c0_75 = arith.constant 0 : index
    %c0_76 = arith.constant 0 : index
    %c0_77 = arith.constant 0 : index
    %183 = vector.load %arg5[%c0_75, %c0_76, %c0_77] : memref<1x8x128xf32, #tpu.memory_space<vmem>>, vector<1x8x128xf32>
    %184 = vector.shape_cast %182 : vector<8x128xf32> to vector<1x8x128xf32>
    %185 = arith.addf %183, %184 : vector<1x8x128xf32>
    %c0_78 = arith.constant 0 : index
    %c0_79 = arith.constant 0 : index
    %c0_80 = arith.constant 0 : index
    %186 = vector.load %arg5[%c0_78, %c0_79, %c0_80] : memref<1x8x128xf32, #tpu.memory_space<vmem>>, vector<1x8x128xf32>
    tpu.vector_store %arg5[%c0_78, %c0_79, %c0_80], %185 {strides = array<i32>} : memref<1x8x128xf32, #tpu.memory_space<vmem>>, vector<1x8x128xf32>,
    return
  }
  func.func @transform_0(%arg0: i32, %arg1: i32) -> (i32, i32, i32) {
    %c3_i32 = arith.constant 3 : i32
    %0 = arith.muli %arg0, %c3_i32 : i32
    %1 = arith.addi %0, %arg1 : i32
    %c0_i32 = arith.constant 0 : i32
    %c0_i32_0 = arith.constant 0 : i32
    %c0_i32_1 = arith.constant 0 : i32
    return %c0_i32, %1, %c0_i32_0 : i32, i32, i32
  }
  func.func @transform_1(%arg0: i32, %arg1: i32) -> (i32, i32) {
    %c0_i32 = arith.constant 0 : i32
    %c0_i32_0 = arith.constant 0 : i32
    %c0_i32_1 = arith.constant 0 : i32
    return %c0_i32, %c0_i32_0 : i32, i32
  }
  func.func @transform_2(%arg0: i32, %arg1: i32) -> (i32, i32) {
    %c0_i32 = arith.constant 0 : i32
    %c0_i32_0 = arith.constant 0 : i32
    %c0_i32_1 = arith.constant 0 : i32
    return %c0_i32, %c0_i32_0 : i32, i32
  }
  func.func @transform_3(%arg0: i32, %arg1: i32) -> (i32, i32, i32) {
    %c0_i32 = arith.constant 0 : i32
    %c0_i32_0 = arith.constant 0 : i32
    %c0_i32_1 = arith.constant 0 : i32
    return %arg0, %c0_i32, %c0_i32_0 : i32, i32, i32
  }
}

</mosaic_0001>

<llo_original>
// kernel: tpu_custom_call.1
$region0: #{tpu_custom_call.1}
  #allocation0 [shape = 'u32[]', space=smem, size = 0x4, offset = 0x4, fixed_abs, tag = 'smem constant byte address 0x4 - core index']
  #allocation1 [shape = 'u32[144,128]{1,0:T(1,128)}', space=vmem, size = 0x12000, scoped, tag = 'internal scratch']
  %s0 = inlined_call_operand.hbm [shape: bf16[2,24,256], index: 0, kind: input, shape index: {}]
  %s1 = inlined_call_operand.hbm [shape: bf16[256,512], index: 1, kind: input, shape index: {}]
  %s2 = inlined_call_operand.hbm [shape: bf16[2048,128], index: 2, kind: input, shape index: {}]
  %s3 = inlined_call_operand.hbm [shape: f32[1,8,128], index: 3, kind: output, shape index: {}]
  %s4 = sld [smem:[#allocation0]]
  $region61: #{tpu_custom_call.1} parent=0
    _
  %s6 = ssub.s32 1, %s4
  %s7 = scalar_select 0, %s6, %s4
  $region1: #{tpu_custom_call.1} parent=0
    #allocation2 [shape = 'u8[16384]{0}', space=vmem, size = 0x4000, scoped, tag = 'input window, operand 0']
    #allocation3 [shape = 's32[2]{0}', space=sflag, size = 0x8, scoped, tag = 'scoped memory for tpu_custom_call.1']
    #allocation4 [shape = 's32[2]{0}', space=sflag, size = 0x8, scoped, tag = 'scoped memory for tpu_custom_call.1']
    #allocation5 [shape = 'u8[262144]{0}', space=vmem, size = 0x40000, scoped, tag = 'input window, operand 1, single buffered']
    #allocation6 [shape = 's32[1]{0}', space=sflag, size = 0x4, scoped, tag = 'scoped memory for tpu_custom_call.1']
    #allocation7 [shape = 'u8[524288]{0}', space=vmem, size = 0x80000, scoped, tag = 'input window, operand 2, single buffered']
    #allocation8 [shape = 'u8[4096]{0}', space=vmem, size = 0x1000, scoped, tag = 'output window, operand 0, single buffered']
    %8 = vsyncpa [#allocation3], 0
    %s9 = scalar_lea.sflag [#allocation3], 1
    %10 = vsyncpa %s9, 0
    %11 = vsyncpa [#allocation6], 0
    %12 = vsyncpa [#allocation4], 0
    loop: start=0, step=1, limit=5
    $region2: #{tpu_custom_call.1} parent=1 // loop_pre_header
      _
    $region3: #{tpu_custom_call.1} parent=1 // loop_header
      %s14 = sphi 0, %s18
      %p15 = scmp.ge.s32.totalorder %s14, 5
      %s21 = sphi 0, %s33
      %s22 = sphi 0, %s29
      %s23 = sphi 0, %s21
      %s24 = sphi 0, %s22
      %s25 = sphi 0, %s23
      %s26 = sphi 0, %s24
      %s40 = sphi 0, %s42
      %s43 = sphi 0, %s40
      %s44 = sphi 0, %s43
      %s60 = sphi 0, %s44
      %s64 = sphi 0, %s64
      %s66 = sphi 0, %s64
      %s67 = sphi 0, %s66
      %s81 = sphi 0, %s67
      %s85 = sphi 0, %s85
      %s87 = sphi 0, %s85
      %s88 = sphi 0, %s87
      %s102 = sphi 0, %s88
      %s108 = sphi 0, %s110
      %s111 = sphi 0, %s108
      %s112 = sphi 0, %s111
      %s128 = sphi 0, %s112
    $region4: #{tpu_custom_call.1} parent=1 // loop_header_branch
      %17 = sbr.rel (%p15) target = $region8
    $region5: #{tpu_custom_call.1} parent=1 // loop_body
      %s19 = ssub.s32 %s14, 1
      %s20 = ssub.s32 %s14, 2
      %s27 = sadd.s32 1, %s22
      %p28 = scmp.ge.s32.totalorder %s27, 3
      %s29 = scalar_select %p28, 0, %s27
      %s30 = sadd.s32 1, %s21
      %s31 = scalar_select %p28, %s30, %s21
      %p32 = scmp.ge.s32.totalorder %s31, 1
      %s33 = scalar_select %p32, 0, %s31
      %s34 = smul.u32 %s21, 3
      %s35 = sadd.s32 %s34, %s22
      %s36 = smul.u32 %s33, 3
      %s37 = sadd.s32 %s36, %s29
      %s38 = ssub.s32 %s35, %s37
      %p39 = scmp.eq.s32.totalorder %s38, 0
      %s41 = sadd.s32 %s40, 1
      %s42 = scalar_select %p39, %s40, %s41
      %p45 = pneg %p39
      %p46 = scmp.eq.s32.totalorder %s14, 2
      %p47 = por %p45, %p46
      %p48 = scmp.ne.s32.totalorder %s40, %s43
      %p49 = scmp.eq.s32.totalorder %s14, 0
      %p50 = por %p48, %p49
      %p51 = scmp.ne.s32.totalorder %s40, %s43
      %p52 = scmp.eq.s32.totalorder %s19, 2
      %p53 = por %p51, %p52
      %p54 = scmp.ne.s32.totalorder %s43, %s44
      %p55 = scmp.eq.s32.totalorder %s19, 0
      %p56 = por %p54, %p55
      %p57 = scmp.ne.s32.totalorder %s43, %s44
      %p58 = scmp.eq.s32.totalorder %s20, 2
      %p59 = por %p57, %p58
      %p61 = scmp.ne.s32.totalorder %s44, %s60
      %p62 = scmp.eq.s32.totalorder %s20, 0
      %p63 = por %p61, %p62
      %s65 = sadd.s32 %s64, 1
      %p68 = scmp.eq.s32.totalorder %s14, 2
      %p69 = scmp.ne.s32.totalorder %s64, %s66
      %p70 = scmp.eq.s32.totalorder %s14, 0
      %p71 = por %p69, %p70
      %p72 = scmp.ne.s32.totalorder %s64, %s66
      %p73 = scmp.eq.s32.totalorder %s19, 2
      %p74 = por %p72, %p73
      %p75 = scmp.ne.s32.totalorder %s66, %s67
      %p76 = scmp.eq.s32.totalorder %s19, 0
      %p77 = por %p75, %p76
      %p78 = scmp.ne.s32.totalorder %s66, %s67
      %p79 = scmp.eq.s32.totalorder %s20, 2
      %p80 = por %p78, %p79
      %p82 = scmp.ne.s32.totalorder %s67, %s81
      %p83 = scmp.eq.s32.totalorder %s20, 0
      %p84 = por %p82, %p83
      %s86 = sadd.s32 %s85, 1
      %p89 = scmp.eq.s32.totalorder %s14, 2
      %p90 = scmp.ne.s32.totalorder %s85, %s87
      %p91 = scmp.eq.s32.totalorder %s14, 0
      %p92 = por %p90, %p91
      %p93 = scmp.ne.s32.totalorder %s85, %s87
      %p94 = scmp.eq.s32.totalorder %s19, 2
      %p95 = por %p93, %p94
      %p96 = scmp.ne.s32.totalorder %s87, %s88
      %p97 = scmp.eq.s32.totalorder %s19, 0
      %p98 = por %p96, %p97
      %p99 = scmp.ne.s32.totalorder %s87, %s88
      %p100 = scmp.eq.s32.totalorder %s20, 2
      %p101 = por %p99, %p100
      %p103 = scmp.ne.s32.totalorder %s88, %s102
      %p104 = scmp.eq.s32.totalorder %s20, 0
      %p105 = por %p103, %p104
      %s106 = ssub.s32 %s21, %s33
      %p107 = scmp.eq.s32.totalorder %s106, 0
      %s109 = sadd.s32 %s108, 1
      %s110 = scalar_select %p107, %s108, %s109
      %p113 = pneg %p107
      %p114 = scmp.eq.s32.totalorder %s14, 2
      %p115 = por %p113, %p114
      %p116 = scmp.ne.s32.totalorder %s108, %s111
      %p117 = scmp.eq.s32.totalorder %s14, 0
      %p118 = por %p116, %p117
      %p119 = scmp.ne.s32.totalorder %s108, %s111
      %p120 = scmp.eq.s32.totalorder %s19, 2
      %p121 = por %p119, %p120
      %p122 = scmp.ne.s32.totalorder %s111, %s112
      %p123 = scmp.eq.s32.totalorder %s19, 0
      %p124 = por %p122, %p123
      %p125 = scmp.ne.s32.totalorder %s111, %s112
      %p126 = scmp.eq.s32.totalorder %s20, 2
      %p127 = por %p125, %p126
      %p129 = scmp.ne.s32.totalorder %s112, %s128
      %p130 = scmp.eq.s32.totalorder %s20, 0
      %p131 = por %p129, %p130
      %p132 = scmp.le.s32.totalorder 1, %s14
      %p133 = scmp.lt.s32.totalorder %s14, 4
      %p134 = pnand %p132, %p133
      %p135 = pneg %p134
      // Predicated region
      $region9: #{tpu_custom_call.1} parent=5 // pred_check
        _
      $region10: #{tpu_custom_call.1} parent=5 // pred_check_branch
        %137 = sbr.rel (%p134) target = $region12
      $region11: #{tpu_custom_call.1} parent=5 // pred_region
        %s138 = ssub.s32 %s14, 1
        // Predicated region
        $region13: #{tpu_custom_call.1} parent=11 // pred_check
          %p139 = pneg %p77
        $region14: #{tpu_custom_call.1} parent=11 // pred_check_branch
          %141 = sbr.rel (%p139) target = $region16
        $region15: #{tpu_custom_call.1} parent=11 // pred_region
          %s143 = ssub.s32 8192, 8192
          %144 = vsyncadd [#allocation6], %s143
          %s145 = sshll.u32 [#allocation5], 4
          %s146 = int_to_ptr.vmem [resolvable:$true] %s145
          %151 = dma.hbm_to_vmem [thread:$0]  %s1, 8192, %s146, [#allocation6], 256, 256, 16
        $region16: #{tpu_custom_call.1} parent=11 // pred_fallthru
          _
        // Predicated region
        $region17: #{tpu_custom_call.1} parent=11 // pred_check
          %p152 = pneg %p98
        $region18: #{tpu_custom_call.1} parent=11 // pred_check_branch
          %154 = sbr.rel (%p152) target = $region20
        $region19: #{tpu_custom_call.1} parent=11 // pred_region
          %s156 = ssub.s32 16384, 16384
          %157 = vsyncadd [#allocation6], %s156
          %s158 = sshll.u32 [#allocation7], 4
          %s159 = int_to_ptr.vmem [resolvable:$true] %s158
          %164 = dma.hbm_to_vmem [thread:$0]  %s2, 16384, %s159, [#allocation6], 64, 64, 4
        $region20: #{tpu_custom_call.1} parent=11 // pred_fallthru
          _
      $region12: #{tpu_custom_call.1} parent=5 // pred_fallthru
        _
      %p165 = scmp.lt.s32.totalorder %s14, 3
      // Predicated region
      $region21: #{tpu_custom_call.1} parent=5 // pred_check
        %p166 = pneg %p165
      $region22: #{tpu_custom_call.1} parent=5 // pred_check_branch
        %168 = sbr.rel (%p166) target = $region24
      $region23: #{tpu_custom_call.1} parent=5 // pred_region
        // Predicated region
        $region25: #{tpu_custom_call.1} parent=23 // pred_check
          %p169 = pneg %p50
        $region26: #{tpu_custom_call.1} parent=23 // pred_check_branch
          %171 = sbr.rel (%p169) target = $region28
        $region27: #{tpu_custom_call.1} parent=23 // pred_region
          %s172 = sand.u32 %s40, 1
          %s173 = scalar_lea.sflag [#allocation3], %s172
          %s174 = sand.u32 %s40, 1
          %s175 = smul.addr %s174, 16
          %s176 = scalar_lea.vmem [#allocation2], %s175
          %s177 = smul.u32 %s21, 3
          %s178 = sadd.s32 %s177, %s22
          %s180 = ssub.s32 256, 256
          %181 = vsyncadd %s173, %s180
          %s182 = smul.addr %s178, 2
          %s183 = smul.addr %s182, 64
          %s184 = scalar_lea.hbm %s0, %s183
          %s185 = sshll.u32 %s176, 4
          %s186 = int_to_ptr.vmem [resolvable:$true] %s185
          %191 = dma.hbm_to_vmem [thread:$0]  %s184, 256, %s186, %s173, 384, 128, 8
        $region28: #{tpu_custom_call.1} parent=23 // pred_fallthru
          _
      $region24: #{tpu_custom_call.1} parent=5 // pred_fallthru
        _
      %p192 = scmp.le.s32.totalorder 1, %s14
      %p193 = scmp.lt.s32.totalorder %s14, 4
      %p194 = pnand %p192, %p193
      %p195 = pneg %p194
      // Predicated region
      $region29: #{tpu_custom_call.1} parent=5 // pred_check
        _
      $region30: #{tpu_custom_call.1} parent=5 // pred_check_branch
        %197 = sbr.rel (%p194) target = $region32
      $region31: #{tpu_custom_call.1} parent=5 // pred_region
        %s198 = ssub.s32 %s14, 1
        %s199 = sand.u32 %s43, 1
        %s200 = scalar_lea.sflag [#allocation3], %s199
        %s201 = sand.u32 %s43, 1
        %s202 = smul.addr %s201, 16
        %s203 = scalar_lea.vmem [#allocation2], %s202
        // Predicated region
        $region33: #{tpu_custom_call.1} parent=31 // pred_check
          %p204 = pneg %p56
        $region34: #{tpu_custom_call.1} parent=31 // pred_check_branch
          %206 = sbr.rel (%p204) target = $region36
        $region35: #{tpu_custom_call.1} parent=31 // pred_region
          %207 = dma.done %s200, 256
        $region36: #{tpu_custom_call.1} parent=31 // pred_fallthru
          _
        // Predicated region
        $region37: #{tpu_custom_call.1} parent=31 // pred_check
          %p208 = pneg %p77
        $region38: #{tpu_custom_call.1} parent=31 // pred_check_branch
          %210 = sbr.rel (%p208) target = $region40
        $region39: #{tpu_custom_call.1} parent=31 // pred_region
          %211 = dma.done [#allocation6], 8192
        $region40: #{tpu_custom_call.1} parent=31 // pred_fallthru
          _
        // Predicated region
        $region41: #{tpu_custom_call.1} parent=31 // pred_check
          %p212 = pneg %p98
        $region42: #{tpu_custom_call.1} parent=31 // pred_check_branch
          %214 = sbr.rel (%p212) target = $region44
        $region43: #{tpu_custom_call.1} parent=31 // pred_region
          %215 = dma.done [#allocation6], 16384
        $region44: #{tpu_custom_call.1} parent=31 // pred_fallthru
          _
        %s216 = sand.u32 %s43, 1
        %s217 = scalar_lea.sflag [#allocation3], %s216
        %s218 = sand.u32 %s43, 1
        %s219 = smul.addr %s218, 16
        %s220 = scalar_lea.vmem [#allocation2], %s219
        %p221 = pneg %p56
        %p222 = pneg %p53
        %p223 = pneg %p77
        %p224 = pneg %p74
        %p225 = pneg %p98
        %p226 = pneg %p95
        %p227 = pneg %p124
        %p228 = pneg %p121
        %s229 = smul.u32 %s23, 3
        %s230 = sadd.s32 %s229, %s24
        %p232 = scmp.eq.s32.totalorder %s24, 0
        // Predicated region
        $region45: #{tpu_custom_call.1} parent=31 // pred_check
          %p233 = pneg %p232
        $region46: #{tpu_custom_call.1} parent=31 // pred_check_branch
          %235 = sbr.rel (%p233) target = $region48
        $region47: #{tpu_custom_call.1} parent=31 // pred_region
          %236 = vst [vmem:[#allocation8] sm:$0xff] 0.0
        $region48: #{tpu_custom_call.1} parent=31 // pred_fallthru
          _
        %v237 = vld [vmem:[%s203] sm:$0xff]
        %v238 = vld [vmem:[%s203 + $0x8] sm:$0xff]
        %v239 = vld [vmem:[#allocation5] sm:$0xff]
        %v240 = vld [vmem:[#allocation5 + $0x8] sm:$0xff]
        %v241 = vld [vmem:[#allocation5 + $0x10] sm:$0xff]
        %v242 = vld [vmem:[#allocation5 + $0x18] sm:$0xff]
        %v243 = vld [vmem:[#allocation5 + $0x20] sm:$0xff]
        %v244 = vld [vmem:[#allocation5 + $0x28] sm:$0xff]
        %v245 = vld [vmem:[#allocation5 + $0x30] sm:$0xff]
        %v246 = vld [vmem:[#allocation5 + $0x38] sm:$0xff]
        %v247 = vld [vmem:[#allocation5 + $0x40] sm:$0xff]
        %v248 = vld [vmem:[#allocation5 + $0x48] sm:$0xff]
        %v249 = vld [vmem:[#allocation5 + $0x50] sm:$0xff]
        %v250 = vld [vmem:[#allocation5 + $0x58] sm:$0xff]
        %v251 = vld [vmem:[#allocation5 + $0x60] sm:$0xff]
        %v252 = vld [vmem:[#allocation5 + $0x68] sm:$0xff]
        %v253 = vld [vmem:[#allocation5 + $0x70] sm:$0xff]
        %v254 = vld [vmem:[#allocation5 + $0x78] sm:$0xff]
        %v255 = vld [vmem:[#allocation5 + $0x80] sm:$0xff]
        %v256 = vld [vmem:[#allocation5 + $0x88] sm:$0xff]
        %v257 = vld [vmem:[#allocation5 + $0x90] sm:$0xff]
        %v258 = vld [vmem:[#allocation5 + $0x98] sm:$0xff]
        %v259 = vld [vmem:[#allocation5 + $0xa0] sm:$0xff]
        %v260 = vld [vmem:[#allocation5 + $0xa8] sm:$0xff]
        %v261 = vld [vmem:[#allocation5 + $0xb0] sm:$0xff]
        %v262 = vld [vmem:[#allocation5 + $0xb8] sm:$0xff]
        %v263 = vld [vmem:[#allocation5 + $0xc0] sm:$0xff]
        %v264 = vld [vmem:[#allocation5 + $0xc8] sm:$0xff]
        %v265 = vld [vmem:[#allocation5 + $0xd0] sm:$0xff]
        %v266 = vld [vmem:[#allocation5 + $0xd8] sm:$0xff]
        %v267 = vld [vmem:[#allocation5 + $0xe0] sm:$0xff]
        %v268 = vld [vmem:[#allocation5 + $0xe8] sm:$0xff]
        %v269 = vld [vmem:[#allocation5 + $0xf0] sm:$0xff]
        %v270 = vld [vmem:[#allocation5 + $0xf8] sm:$0xff]
        %v271 = vld [vmem:[#allocation5 + $0x100] sm:$0xff]
        %v272 = vld [vmem:[#allocation5 + $0x108] sm:$0xff]
        %v273 = vld [vmem:[#allocation5 + $0x110] sm:$0xff]
        %v274 = vld [vmem:[#allocation5 + $0x118] sm:$0xff]
        %v275 = vld [vmem:[#allocation5 + $0x120] sm:$0xff]
        %v276 = vld [vmem:[#allocation5 + $0x128] sm:$0xff]
        %v277 = vld [vmem:[#allocation5 + $0x130] sm:$0xff]
        %v278 = vld [vmem:[#allocation5 + $0x138] sm:$0xff]
        %v279 = vld [vmem:[#allocation5 + $0x140] sm:$0xff]
        %v280 = vld [vmem:[#allocation5 + $0x148] sm:$0xff]
        %v281 = vld [vmem:[#allocation5 + $0x150] sm:$0xff]
        %v282 = vld [vmem:[#allocation5 + $0x158] sm:$0xff]
        %v283 = vld [vmem:[#allocation5 + $0x160] sm:$0xff]
        %v284 = vld [vmem:[#allocation5 + $0x168] sm:$0xff]
        %v285 = vld [vmem:[#allocation5 + $0x170] sm:$0xff]
        %v286 = vld [vmem:[#allocation5 + $0x178] sm:$0xff]
        %v287 = vld [vmem:[#allocation5 + $0x180] sm:$0xff]
        %v288 = vld [vmem:[#allocation5 + $0x188] sm:$0xff]
        %v289 = vld [vmem:[#allocation5 + $0x190] sm:$0xff]
        %v290 = vld [vmem:[#allocation5 + $0x198] sm:$0xff]
        %v291 = vld [vmem:[#allocation5 + $0x1a0] sm:$0xff]
        %v292 = vld [vmem:[#allocation5 + $0x1a8] sm:$0xff]
        %v293 = vld [vmem:[#allocation5 + $0x1b0] sm:$0xff]
        %v294 = vld [vmem:[#allocation5 + $0x1b8] sm:$0xff]
        %v295 = vld [vmem:[#allocation5 + $0x1c0] sm:$0xff]
        %v296 = vld [vmem:[#allocation5 + $0x1c8] sm:$0xff]
        %v297 = vld [vmem:[#allocation5 + $0x1d0] sm:$0xff]
        %v298 = vld [vmem:[#allocation5 + $0x1d8] sm:$0xff]
        %v299 = vld [vmem:[#allocation5 + $0x1e0] sm:$0xff]
        %v300 = vld [vmem:[#allocation5 + $0x1e8] sm:$0xff]
        %v301 = vld [vmem:[#allocation5 + $0x1f0] sm:$0xff]
        %v302 = vld [vmem:[#allocation5 + $0x1f8] sm:$0xff]
        %v305 = vunpack.c.l.b16 %v237
        %v306 = vunpack.c.h.b16 %v237
        %v307 = vunpack.c.l.b16 %v238
        %v308 = vunpack.c.h.b16 %v238
        %v309 = vpack.c.b16 %v307, %v305
        %v310 = vpack.c.b16 %v308, %v306
        %v377 = vunpack.c.l.b16 %v239
        %v378 = vunpack.c.h.b16 %v239
        %v379 = vunpack.c.l.b16 %v240
        %v380 = vunpack.c.h.b16 %v240
        %v381 = vunpack.c.l.b16 %v241
        %v382 = vunpack.c.h.b16 %v241
        %v383 = vunpack.c.l.b16 %v242
        %v384 = vunpack.c.h.b16 %v242
        %v385 = vunpack.c.l.b16 %v243
        %v386 = vunpack.c.h.b16 %v243
        %v387 = vunpack.c.l.b16 %v244
        %v388 = vunpack.c.h.b16 %v244
        %v389 = vunpack.c.l.b16 %v245
        %v390 = vunpack.c.h.b16 %v245
        %v391 = vunpack.c.l.b16 %v246
        %v392 = vunpack.c.h.b16 %v246
        %v393 = vunpack.c.l.b16 %v247
        %v394 = vunpack.c.h.b16 %v247
        %v395 = vunpack.c.l.b16 %v248
        %v396 = vunpack.c.h.b16 %v248
        %v397 = vunpack.c.l.b16 %v249
        %v398 = vunpack.c.h.b16 %v249
        %v399 = vunpack.c.l.b16 %v250
        %v400 = vunpack.c.h.b16 %v250
        %v401 = vunpack.c.l.b16 %v251
        %v402 = vunpack.c.h.b16 %v251
        %v403 = vunpack.c.l.b16 %v252
        %v404 = vunpack.c.h.b16 %v252
        %v405 = vunpack.c.l.b16 %v253
        %v406 = vunpack.c.h.b16 %v253
        %v407 = vunpack.c.l.b16 %v254
        %v408 = vunpack.c.h.b16 %v254
        %v409 = vunpack.c.l.b16 %v255
        %v410 = vunpack.c.h.b16 %v255
        %v411 = vunpack.c.l.b16 %v256
        %v412 = vunpack.c.h.b16 %v256
        %v413 = vunpack.c.l.b16 %v257
        %v414 = vunpack.c.h.b16 %v257
        %v415 = vunpack.c.l.b16 %v258
        %v416 = vunpack.c.h.b16 %v258
        %v417 = vunpack.c.l.b16 %v259
        %v418 = vunpack.c.h.b16 %v259
        %v419 = vunpack.c.l.b16 %v260
        %v420 = vunpack.c.h.b16 %v260
        %v421 = vunpack.c.l.b16 %v261
        %v422 = vunpack.c.h.b16 %v261
        %v423 = vunpack.c.l.b16 %v262
        %v424 = vunpack.c.h.b16 %v262
        %v425 = vunpack.c.l.b16 %v263
        %v426 = vunpack.c.h.b16 %v263
        %v427 = vunpack.c.l.b16 %v264
        %v428 = vunpack.c.h.b16 %v264
        %v429 = vunpack.c.l.b16 %v265
        %v430 = vunpack.c.h.b16 %v265
        %v431 = vunpack.c.l.b16 %v266
        %v432 = vunpack.c.h.b16 %v266
        %v433 = vunpack.c.l.b16 %v267
        %v434 = vunpack.c.h.b16 %v267
        %v435 = vunpack.c.l.b16 %v268
        %v436 = vunpack.c.h.b16 %v268
        %v437 = vunpack.c.l.b16 %v269
        %v438 = vunpack.c.h.b16 %v269
        %v439 = vunpack.c.l.b16 %v270
        %v440 = vunpack.c.h.b16 %v270
        %v441 = vunpack.c.l.b16 %v271
        %v442 = vunpack.c.h.b16 %v271
        %v443 = vunpack.c.l.b16 %v272
        %v444 = vunpack.c.h.b16 %v272
        %v445 = vunpack.c.l.b16 %v273
        %v446 = vunpack.c.h.b16 %v273
        %v447 = vunpack.c.l.b16 %v274
        %v448 = vunpack.c.h.b16 %v274
        %v449 = vunpack.c.l.b16 %v275
        %v450 = vunpack.c.h.b16 %v275
        %v451 = vunpack.c.l.b16 %v276
        %v452 = vunpack.c.h.b16 %v276
        %v453 = vunpack.c.l.b16 %v277
        %v454 = vunpack.c.h.b16 %v277
        %v455 = vunpack.c.l.b16 %v278
        %v456 = vunpack.c.h.b16 %v278
        %v457 = vunpack.c.l.b16 %v279
        %v458 = vunpack.c.h.b16 %v279
        %v459 = vunpack.c.l.b16 %v280
        %v460 = vunpack.c.h.b16 %v280
        %v461 = vunpack.c.l.b16 %v281
        %v462 = vunpack.c.h.b16 %v281
        %v463 = vunpack.c.l.b16 %v282
        %v464 = vunpack.c.h.b16 %v282
        %v465 = vunpack.c.l.b16 %v283
        %v466 = vunpack.c.h.b16 %v283
        %v467 = vunpack.c.l.b16 %v284
        %v468 = vunpack.c.h.b16 %v284
        %v469 = vunpack.c.l.b16 %v285
        %v470 = vunpack.c.h.b16 %v285
        %v471 = vunpack.c.l.b16 %v286
        %v472 = vunpack.c.h.b16 %v286
        %v473 = vunpack.c.l.b16 %v287
        %v474 = vunpack.c.h.b16 %v287
        %v475 = vunpack.c.l.b16 %v288
        %v476 = vunpack.c.h.b16 %v288
        %v477 = vunpack.c.l.b16 %v289
        %v478 = vunpack.c.h.b16 %v289
        %v479 = vunpack.c.l.b16 %v290
        %v480 = vunpack.c.h.b16 %v290
        %v481 = vunpack.c.l.b16 %v291
        %v482 = vunpack.c.h.b16 %v291
        %v483 = vunpack.c.l.b16 %v292
        %v484 = vunpack.c.h.b16 %v292
        %v485 = vunpack.c.l.b16 %v293
        %v486 = vunpack.c.h.b16 %v293
        %v487 = vunpack.c.l.b16 %v294
        %v488 = vunpack.c.h.b16 %v294
        %v489 = vunpack.c.l.b16 %v295
        %v490 = vunpack.c.h.b16 %v295
        %v491 = vunpack.c.l.b16 %v296
        %v492 = vunpack.c.h.b16 %v296
        %v493 = vunpack.c.l.b16 %v297
        %v494 = vunpack.c.h.b16 %v297
        %v495 = vunpack.c.l.b16 %v298
        %v496 = vunpack.c.h.b16 %v298
        %v497 = vunpack.c.l.b16 %v299
        %v498 = vunpack.c.h.b16 %v299
        %v499 = vunpack.c.l.b16 %v300
        %v500 = vunpack.c.h.b16 %v300
        %v501 = vunpack.c.l.b16 %v301
        %v502 = vunpack.c.h.b16 %v301
        %v503 = vunpack.c.l.b16 %v302
        %v504 = vunpack.c.h.b16 %v302
        %v505 = vpack.c.b16 %v381, %v377
        %v506 = vpack.c.b16 %v382, %v378
        %v507 = vpack.c.b16 %v383, %v379
        %v508 = vpack.c.b16 %v384, %v380
        %v509 = vpack.c.b16 %v389, %v385
        %v510 = vpack.c.b16 %v390, %v386
        %v511 = vpack.c.b16 %v391, %v387
        %v512 = vpack.c.b16 %v392, %v388
        %v513 = vpack.c.b16 %v397, %v393
        %v514 = vpack.c.b16 %v398, %v394
        %v515 = vpack.c.b16 %v399, %v395
        %v516 = vpack.c.b16 %v400, %v396
        %v517 = vpack.c.b16 %v405, %v401
        %v518 = vpack.c.b16 %v406, %v402
        %v519 = vpack.c.b16 %v407, %v403
        %v520 = vpack.c.b16 %v408, %v404
        %v521 = vpack.c.b16 %v413, %v409
        %v522 = vpack.c.b16 %v414, %v410
        %v523 = vpack.c.b16 %v415, %v411
        %v524 = vpack.c.b16 %v416, %v412
        %v525 = vpack.c.b16 %v421, %v417
        %v526 = vpack.c.b16 %v422, %v418
        %v527 = vpack.c.b16 %v423, %v419
        %v528 = vpack.c.b16 %v424, %v420
        %v529 = vpack.c.b16 %v429, %v425
        %v530 = vpack.c.b16 %v430, %v426
        %v531 = vpack.c.b16 %v431, %v427
        %v532 = vpack.c.b16 %v432, %v428
        %v533 = vpack.c.b16 %v437, %v433
        %v534 = vpack.c.b16 %v438, %v434
        %v535 = vpack.c.b16 %v439, %v435
        %v536 = vpack.c.b16 %v440, %v436
        %v537 = vpack.c.b16 %v445, %v441
        %v538 = vpack.c.b16 %v446, %v442
        %v539 = vpack.c.b16 %v447, %v443
        %v540 = vpack.c.b16 %v448, %v444
        %v541 = vpack.c.b16 %v453, %v449
        %v542 = vpack.c.b16 %v454, %v450
        %v543 = vpack.c.b16 %v455, %v451
        %v544 = vpack.c.b16 %v456, %v452
        %v545 = vpack.c.b16 %v461, %v457
        %v546 = vpack.c.b16 %v462, %v458
        %v547 = vpack.c.b16 %v463, %v459
        %v548 = vpack.c.b16 %v464, %v460
        %v549 = vpack.c.b16 %v469, %v465
        %v550 = vpack.c.b16 %v470, %v466
        %v551 = vpack.c.b16 %v471, %v467
        %v552 = vpack.c.b16 %v472, %v468
        %v553 = vpack.c.b16 %v477, %v473
        %v554 = vpack.c.b16 %v478, %v474
        %v555 = vpack.c.b16 %v479, %v475
        %v556 = vpack.c.b16 %v480, %v476
        %v557 = vpack.c.b16 %v485, %v481
        %v558 = vpack.c.b16 %v486, %v482
        %v559 = vpack.c.b16 %v487, %v483
        %v560 = vpack.c.b16 %v488, %v484
        %v561 = vpack.c.b16 %v493, %v489
        %v562 = vpack.c.b16 %v494, %v490
        %v563 = vpack.c.b16 %v495, %v491
        %v564 = vpack.c.b16 %v496, %v492
        %v565 = vpack.c.b16 %v501, %v497
        %v566 = vpack.c.b16 %v502, %v498
        %v567 = vpack.c.b16 %v503, %v499
        %v568 = vpack.c.b16 %v504, %v500
        %633 = vmatprep.subr.bf16.mxu0 %v506
        %634 = vmatpush1.bf16.msra.mxu0 %v505
        %635 = vmatprep.subr.bf16.mxu0 %v510
        %636 = vmatpush1.bf16.msra.mxu0 %v509
        %637 = vmatprep.subr.bf16.mxu0 %v514
        %638 = vmatpush1.bf16.msra.mxu0 %v513
        %639 = vmatprep.subr.bf16.mxu0 %v518
        %640 = vmatpush1.bf16.msra.mxu0 %v517
        %641 = vmatprep.subr.bf16.mxu0 %v522
        %642 = vmatpush1.bf16.msra.mxu0 %v521
        %643 = vmatprep.subr.bf16.mxu0 %v526
        %644 = vmatpush1.bf16.msra.mxu0 %v525
        %645 = vmatprep.subr.bf16.mxu0 %v530
        %646 = vmatpush1.bf16.msra.mxu0 %v529
        %647 = vmatprep.subr.bf16.mxu0 %v534
        %648 = vmatpush1.bf16.msra.mxu0 %v533
        %649 = vmatprep.subr.bf16.mxu0 %v538
        %650 = vmatpush1.bf16.msra.mxu0 %v537
        %651 = vmatprep.subr.bf16.mxu0 %v542
        %652 = vmatpush1.bf16.msra.mxu0 %v541
        %653 = vmatprep.subr.bf16.mxu0 %v546
        %654 = vmatpush1.bf16.msra.mxu0 %v545
        %655 = vmatprep.subr.bf16.mxu0 %v550
        %656 = vmatpush1.bf16.msra.mxu0 %v549
        %657 = vmatprep.subr.bf16.mxu0 %v554
        %658 = vmatpush1.bf16.msra.mxu0 %v553
        %659 = vmatprep.subr.bf16.mxu0 %v558
        %660 = vmatpush1.bf16.msra.mxu0 %v557
        %661 = vmatprep.subr.bf16.mxu0 %v562
        %662 = vmatpush1.bf16.msra.mxu0 %v561
        %663 = vmatprep.subr.bf16.mxu0 %v566
        %664 = vmatpush1.bf16.msra.mxu0 %v565
        %665 = vmatprep.mubr.bf16.mxu0 %v310
        %666 = vmatmul.mubr.bf16.gmra.mrb[0].mxu0 %v309
        %v667 = vpop.f32.mrb[0].mxu0
        %v668 = vadd.f32 0.0, %v667
        %v669 = vpop.f32.mrb[0].mxu0
        %v670 = vadd.f32 0.0, %v669
        %v671 = vpop.f32.mrb[0].mxu0
        %v672 = vadd.f32 0.0, %v671
        %v673 = vpop.f32.mrb[0].mxu0
        %v674 = vadd.f32 0.0, %v673
        %675 = vdwg.mxu0
        %676 = vmatprep.subr.bf16.mxu0 %v508
        %677 = vmatpush1.bf16.msra.mxu0 %v507
        %678 = vmatprep.subr.bf16.mxu0 %v512
        %679 = vmatpush1.bf16.msra.mxu0 %v511
        %680 = vmatprep.subr.bf16.mxu0 %v516
        %681 = vmatpush1.bf16.msra.mxu0 %v515
        %682 = vmatprep.subr.bf16.mxu0 %v520
        %683 = vmatpush1.bf16.msra.mxu0 %v519
        %684 = vmatprep.subr.bf16.mxu0 %v524
        %685 = vmatpush1.bf16.msra.mxu0 %v523
        %686 = vmatprep.subr.bf16.mxu0 %v528
        %687 = vmatpush1.bf16.msra.mxu0 %v527
        %688 = vmatprep.subr.bf16.mxu0 %v532
        %689 = vmatpush1.bf16.msra.mxu0 %v531
        %690 = vmatprep.subr.bf16.mxu0 %v536
        %691 = vmatpush1.bf16.msra.mxu0 %v535
        %692 = vmatprep.subr.bf16.mxu0 %v540
        %693 = vmatpush1.bf16.msra.mxu0 %v539
        %694 = vmatprep.subr.bf16.mxu0 %v544
        %695 = vmatpush1.bf16.msra.mxu0 %v543
        %696 = vmatprep.subr.bf16.mxu0 %v548
        %697 = vmatpush1.bf16.msra.mxu0 %v547
        %698 = vmatprep.subr.bf16.mxu0 %v552
        %699 = vmatpush1.bf16.msra.mxu0 %v551
        %700 = vmatprep.subr.bf16.mxu0 %v556
        %701 = vmatpush1.bf16.msra.mxu0 %v555
        %702 = vmatprep.subr.bf16.mxu0 %v560
        %703 = vmatpush1.bf16.msra.mxu0 %v559
        %704 = vmatprep.subr.bf16.mxu0 %v564
        %705 = vmatpush1.bf16.msra.mxu0 %v563
        %706 = vmatprep.subr.bf16.mxu0 %v568
        %707 = vmatpush1.bf16.msra.mxu0 %v567
        %708 = vmatprep.mubr.bf16.mxu0 %v310
        %709 = vmatmul.mubr.bf16.gmra.mrb[0].mxu0 %v309
        %v710 = vpop.f32.mrb[0].mxu0
        %v711 = vadd.f32 0.0, %v710
        %v712 = vpop.f32.mrb[0].mxu0
        %v713 = vadd.f32 0.0, %v712
        %v714 = vpop.f32.mrb[0].mxu0
        %v715 = vadd.f32 0.0, %v714
        %v716 = vpop.f32.mrb[0].mxu0
        %v717 = vadd.f32 0.0, %v716
        %718 = vdwg.mxu0
        %v719 = vand.u32 2147483647, %v668
        %v720 = vand.u32 2147483647, %v670
        %v721 = vand.u32 2147483647, %v672
        %v722 = vand.u32 2147483647, %v674
        %v723 = vand.u32 2147483647, %v711
        %v724 = vand.u32 2147483647, %v713
        %v725 = vand.u32 2147483647, %v715
        %v726 = vand.u32 2147483647, %v717
        %v727 = vmul.f32 %v719, %v719
        %v728 = vmul.f32 %v720, %v720
        %v729 = vmul.f32 %v721, %v721
        %v730 = vmul.f32 %v722, %v722
        %v731 = vmul.f32 %v723, %v723
        %v732 = vmul.f32 %v724, %v724
        %v733 = vmul.f32 %v725, %v725
        %v734 = vmul.f32 %v726, %v726
        %v735 = vadd.f32 %v727, %v731
        %v736 = vadd.f32 %v728, %v732
        %v737 = vadd.f32 %v729, %v733
        %v738 = vadd.f32 %v730, %v734
        %v739 = vadd.f32 %v735, 1e-10
        %v740 = vadd.f32 %v736, 1e-10
        %v741 = vadd.f32 %v737, 1e-10
        %v742 = vadd.f32 %v738, 1e-10
        %v743 = vrsqrt.pop %v739
        %v744 = vmul.f32 %v739, %v743
        %vm745 = vcmp.eq.f32.partialorder %v739, inf
        %v746 = vsel %vm745, %v739, %v744
        %vm747 = vcmp.eq.f32.partialorder %v739, 0.0
        %v748 = vand.u32 %v739, 2147483648
        %v749 = vsel %vm747, %v748, %v746
        %v750 = vrsqrt.pop %v740
        %v751 = vmul.f32 %v740, %v750
        %vm752 = vcmp.eq.f32.partialorder %v740, inf
        %v753 = vsel %vm752, %v740, %v751
        %vm754 = vcmp.eq.f32.partialorder %v740, 0.0
        %v755 = vand.u32 %v740, 2147483648
        %v756 = vsel %vm754, %v755, %v753
        %v757 = vrsqrt.pop %v741
        %v758 = vmul.f32 %v741, %v757
        %vm759 = vcmp.eq.f32.partialorder %v741, inf
        %v760 = vsel %vm759, %v741, %v758
        %vm761 = vcmp.eq.f32.partialorder %v741, 0.0
        %v762 = vand.u32 %v741, 2147483648
        %v763 = vsel %vm761, %v762, %v760
        %v764 = vrsqrt.pop %v742
        %v765 = vmul.f32 %v742, %v764
        %vm766 = vcmp.eq.f32.partialorder %v742, inf
        %v767 = vsel %vm766, %v742, %v765
        %vm768 = vcmp.eq.f32.partialorder %v742, 0.0
        %v769 = vand.u32 %v742, 2147483648
        %v770 = vsel %vm768, %v769, %v767
        %v771 = vadd.f32 %v719, 1e-10
        %v772 = vadd.f32 %v720, 1e-10
        %v773 = vadd.f32 %v721, 1e-10
        %v774 = vadd.f32 %v722, 1e-10
        %v775 = vand.u32 2147483647, %v771
        %v776 = vand.u32 2147483647, %v723
        %v777 = vmin.f32 %v775, %v776
        %v778 = vmax.f32 %v775, %v776
        %v779 = vrcp.pop %v778
        %v780 = vmul.f32 %v777, %v779
        %v781 = vmul.f32 %v780, %v780
        %v782 = vmul.f32 0.002785687, %v781
        %v783 = vadd.f32 %v782, -0.015866
        %v784 = vmul.f32 %v783, %v781
        %v785 = vadd.f32 %v784, 0.04247222
        %v786 = vmul.f32 %v785, %v781
        %v787 = vadd.f32 %v786, -0.074975304
        %v788 = vmul.f32 %v787, %v781
        %v789 = vadd.f32 %v788, 0.1064488
        %v790 = vmul.f32 %v789, %v781
        %v791 = vadd.f32 %v790, -0.14207031
        %v792 = vmul.f32 %v791, %v781
        %v793 = vadd.f32 %v792, 0.19993454
        %v794 = vmul.f32 %v793, %v781
        %v795 = vadd.f32 %v794, -0.33333147
        %v796 = vmul.f32 %v795, %v781
        %v797 = vmul.f32 %v796, %v780
        %v798 = vadd.f32 %v797, %v780
        %vm799 = vcmp.gt.f32.partialorder %v776, %v775
        %v800 = vsub.f32 1.5707964, %v798
        %v801 = vsel %vm799, %v800, %v798
        %vm802 = vcmp.lt.f32.partialorder %v771, 0.0
        %v803 = vsub.f32 3.1415927, %v801
        %v804 = vsel %vm802, %v803, %v801
        %vm805 = vcmp.lt.s32.totalorder %v771, 0
        %v806 = vsel %vm805, 3.1415927, 0.0
        %vm807 = vcmp.eq.f32.partialorder %v723, 0.0
        %v808 = vsel %vm807, %v806, %v804
        %vm809 = vcmp.ne.f32.partialorder %v771, %v771
        %vm810 = vcmp.ne.f32.partialorder %v723, %v723
        %vm811 = vmor %vm809, %vm810
        %v812 = vsel %vm811, nan, %v808
        %vm813 = vcmp.lt.f32.partialorder %v771, 0.0
        %v814 = vsel %vm813, 2.3561945, 0.7853982
        %vm815 = vcmp.eq.s32.totalorder %v775, inf
        %vm816 = vcmp.eq.s32.totalorder %v776, inf
        %vm817 = vmand %vm815, %vm816
        %v818 = vsel %vm817, %v814, %v812
        %v819 = vand.u32 2147483647, %v818
        %v820 = vand.u32 %v723, 2147483648
        %v821 = vor.u32 %v819, %v820
        %v822 = vand.u32 2147483647, %v772
        %v823 = vand.u32 2147483647, %v724
        %v824 = vmin.f32 %v822, %v823
        %v825 = vmax.f32 %v822, %v823
        %v826 = vrcp.pop %v825
        %v827 = vmul.f32 %v824, %v826
        %v828 = vmul.f32 %v827, %v827
        %v829 = vmul.f32 0.002785687, %v828
        %v830 = vadd.f32 %v829, -0.015866
        %v831 = vmul.f32 %v830, %v828
        %v832 = vadd.f32 %v831, 0.04247222
        %v833 = vmul.f32 %v832, %v828
        %v834 = vadd.f32 %v833, -0.074975304
        %v835 = vmul.f32 %v834, %v828
        %v836 = vadd.f32 %v835, 0.1064488
        %v837 = vmul.f32 %v836, %v828
        %v838 = vadd.f32 %v837, -0.14207031
        %v839 = vmul.f32 %v838, %v828
        %v840 = vadd.f32 %v839, 0.19993454
        %v841 = vmul.f32 %v840, %v828
        %v842 = vadd.f32 %v841, -0.33333147
        %v843 = vmul.f32 %v842, %v828
        %v844 = vmul.f32 %v843, %v827
        %v845 = vadd.f32 %v844, %v827
        %vm846 = vcmp.gt.f32.partialorder %v823, %v822
        %v847 = vsub.f32 1.5707964, %v845
        %v848 = vsel %vm846, %v847, %v845
        %vm849 = vcmp.lt.f32.partialorder %v772, 0.0
        %v850 = vsub.f32 3.1415927, %v848
        %v851 = vsel %vm849, %v850, %v848
        %vm852 = vcmp.lt.s32.totalorder %v772, 0
        %v853 = vsel %vm852, 3.1415927, 0.0
        %vm854 = vcmp.eq.f32.partialorder %v724, 0.0
        %v855 = vsel %vm854, %v853, %v851
        %vm856 = vcmp.ne.f32.partialorder %v772, %v772
        %vm857 = vcmp.ne.f32.partialorder %v724, %v724
        %vm858 = vmor %vm856, %vm857
        %v859 = vsel %vm858, nan, %v855
        %vm860 = vcmp.lt.f32.partialorder %v772, 0.0
        %v861 = vsel %vm860, 2.3561945, 0.7853982
        %vm862 = vcmp.eq.s32.totalorder %v822, inf
        %vm863 = vcmp.eq.s32.totalorder %v823, inf
        %vm864 = vmand %vm862, %vm863
        %v865 = vsel %vm864, %v861, %v859
        %v866 = vand.u32 2147483647, %v865
        %v867 = vand.u32 %v724, 2147483648
        %v868 = vor.u32 %v866, %v867
        %v869 = vand.u32 2147483647, %v773
        %v870 = vand.u32 2147483647, %v725
        %v871 = vmin.f32 %v869, %v870
        %v872 = vmax.f32 %v869, %v870
        %v873 = vrcp.pop %v872
        %v874 = vmul.f32 %v871, %v873
        %v875 = vmul.f32 %v874, %v874
        %v876 = vmul.f32 0.002785687, %v875
        %v877 = vadd.f32 %v876, -0.015866
        %v878 = vmul.f32 %v877, %v875
        %v879 = vadd.f32 %v878, 0.04247222
        %v880 = vmul.f32 %v879, %v875
        %v881 = vadd.f32 %v880, -0.074975304
        %v882 = vmul.f32 %v881, %v875
        %v883 = vadd.f32 %v882, 0.1064488
        %v884 = vmul.f32 %v883, %v875
        %v885 = vadd.f32 %v884, -0.14207031
        %v886 = vmul.f32 %v885, %v875
        %v887 = vadd.f32 %v886, 0.19993454
        %v888 = vmul.f32 %v887, %v875
        %v889 = vadd.f32 %v888, -0.33333147
        %v890 = vmul.f32 %v889, %v875
        %v891 = vmul.f32 %v890, %v874
        %v892 = vadd.f32 %v891, %v874
        %vm893 = vcmp.gt.f32.partialorder %v870, %v869
        %v894 = vsub.f32 1.5707964, %v892
        %v895 = vsel %vm893, %v894, %v892
        %vm896 = vcmp.lt.f32.partialorder %v773, 0.0
        %v897 = vsub.f32 3.1415927, %v895
        %v898 = vsel %vm896, %v897, %v895
        %vm899 = vcmp.lt.s32.totalorder %v773, 0
        %v900 = vsel %vm899, 3.1415927, 0.0
        %vm901 = vcmp.eq.f32.partialorder %v725, 0.0
        %v902 = vsel %vm901, %v900, %v898
        %vm903 = vcmp.ne.f32.partialorder %v773, %v773
        %vm904 = vcmp.ne.f32.partialorder %v725, %v725
        %vm905 = vmor %vm903, %vm904
        %v906 = vsel %vm905, nan, %v902
        %vm907 = vcmp.lt.f32.partialorder %v773, 0.0
        %v908 = vsel %vm907, 2.3561945, 0.7853982
        %vm909 = vcmp.eq.s32.totalorder %v869, inf
        %vm910 = vcmp.eq.s32.totalorder %v870, inf
        %vm911 = vmand %vm909, %vm910
        %v912 = vsel %vm911, %v908, %v906
        %v913 = vand.u32 2147483647, %v912
        %v914 = vand.u32 %v725, 2147483648
        %v915 = vor.u32 %v913, %v914
        %v916 = vand.u32 2147483647, %v774
        %v917 = vand.u32 2147483647, %v726
        %v918 = vmin.f32 %v916, %v917
        %v919 = vmax.f32 %v916, %v917
        %v920 = vrcp.pop %v919
        %v921 = vmul.f32 %v918, %v920
        %v922 = vmul.f32 %v921, %v921
        %v923 = vmul.f32 0.002785687, %v922
        %v924 = vadd.f32 %v923, -0.015866
        %v925 = vmul.f32 %v924, %v922
        %v926 = vadd.f32 %v925, 0.04247222
        %v927 = vmul.f32 %v926, %v922
        %v928 = vadd.f32 %v927, -0.074975304
        %v929 = vmul.f32 %v928, %v922
        %v930 = vadd.f32 %v929, 0.1064488
        %v931 = vmul.f32 %v930, %v922
        %v932 = vadd.f32 %v931, -0.14207031
        %v933 = vmul.f32 %v932, %v922
        %v934 = vadd.f32 %v933, 0.19993454
        %v935 = vmul.f32 %v934, %v922
        %v936 = vadd.f32 %v935, -0.33333147
        %v937 = vmul.f32 %v936, %v922
        %v938 = vmul.f32 %v937, %v921
        %v939 = vadd.f32 %v938, %v921
        %vm940 = vcmp.gt.f32.partialorder %v917, %v916
        %v941 = vsub.f32 1.5707964, %v939
        %v942 = vsel %vm940, %v941, %v939
        %vm943 = vcmp.lt.f32.partialorder %v774, 0.0
        %v944 = vsub.f32 3.1415927, %v942
        %v945 = vsel %vm943, %v944, %v942
        %vm946 = vcmp.lt.s32.totalorder %v774, 0
        %v947 = vsel %vm946, 3.1415927, 0.0
        %vm948 = vcmp.eq.f32.partialorder %v726, 0.0
        %v949 = vsel %vm948, %v947, %v945
        %vm950 = vcmp.ne.f32.partialorder %v774, %v774
        %vm951 = vcmp.ne.f32.partialorder %v726, %v726
        %vm952 = vmor %vm950, %vm951
        %v953 = vsel %vm952, nan, %v949
        %vm954 = vcmp.lt.f32.partialorder %v774, 0.0
        %v955 = vsel %vm954, 2.3561945, 0.7853982
        %vm956 = vcmp.eq.s32.totalorder %v916, inf
        %vm957 = vcmp.eq.s32.totalorder %v917, inf
        %vm958 = vmand %vm956, %vm957
        %v959 = vsel %vm958, %v955, %v953
        %v960 = vand.u32 2147483647, %v959
        %v961 = vand.u32 %v726, 2147483648
        %v962 = vor.u32 %v960, %v961
        %v963 = vadd.f32 %v821, 6.2831855
        %v964 = vadd.f32 %v868, 6.2831855
        %v965 = vadd.f32 %v915, 6.2831855
        %v966 = vadd.f32 %v962, 6.2831855
        %v967 = vmul.f32 %v963, 8.0
        %v968 = vmul.f32 %v964, 8.0
        %v969 = vmul.f32 %v965, 8.0
        %v970 = vmul.f32 %v966, 8.0
        %v971 = vrcp.pop 6.2831855
        %v972 = vmul.f32 %v967, %v971
        %v973 = vmul.f32 %v968, %v971
        %v974 = vmul.f32 %v969, %v971
        %v975 = vmul.f32 %v970, %v971
        %v976 = vfloor.f32 %v972
        %v977 = vfloor.f32 %v973
        %v978 = vfloor.f32 %v974
        %v979 = vfloor.f32 %v975
        %v980 = vsub.f32 %v972, %v976
        %v981 = vsub.f32 %v973, %v977
        %v982 = vsub.f32 %v974, %v978
        %v983 = vsub.f32 %v975, %v979
        %vm984 = vcmp.ge.f32.partialorder %v976, 8.0
        %vm985 = vcmp.ge.f32.partialorder %v977, 8.0
        %vm986 = vcmp.ge.f32.partialorder %v978, 8.0
        %vm987 = vcmp.ge.f32.partialorder %v979, 8.0
        %v988 = vsub.f32 %v976, 8.0
        %v989 = vsub.f32 %v977, 8.0
        %v990 = vsub.f32 %v978, 8.0
        %v991 = vsub.f32 %v979, 8.0
        %v992 = vsel %vm984, %v988, %v976
        %v993 = vsel %vm985, %v989, %v977
        %v994 = vsel %vm986, %v990, %v978
        %v995 = vsel %vm987, %v991, %v979
        %v996 = vadd.f32 %v992, 1.0
        %v997 = vadd.f32 %v993, 1.0
        %v998 = vadd.f32 %v994, 1.0
        %v999 = vadd.f32 %v995, 1.0
        %vm1000 = vcmp.ge.f32.partialorder %v996, 8.0
        %vm1001 = vcmp.ge.f32.partialorder %v997, 8.0
        %vm1002 = vcmp.ge.f32.partialorder %v998, 8.0
        %vm1003 = vcmp.ge.f32.partialorder %v999, 8.0
        %v1004 = vsub.f32 %v996, 8.0
        %v1005 = vsub.f32 %v997, 8.0
        %v1006 = vsub.f32 %v998, 8.0
        %v1007 = vsub.f32 %v999, 8.0
        %v1008 = vsel %vm1000, %v1004, %v996
        %v1009 = vsel %vm1001, %v1005, %v997
        %v1010 = vsel %vm1002, %v1006, %v998
        %v1011 = vsel %vm1003, %v1007, %v999
        %v1012 = vsub.f32 1.0, %v980
        %v1013 = vsub.f32 1.0, %v981
        %v1014 = vsub.f32 1.0, %v982
        %v1015 = vsub.f32 1.0, %v983
        %v1016 = vmul.f32 %v1012, %v749
        %v1017 = vmul.f32 %v1013, %v756
        %v1018 = vmul.f32 %v1014, %v763
        %v1019 = vmul.f32 %v1015, %v770
        %v1020 = vmul.f32 %v980, %v749
        %v1021 = vmul.f32 %v981, %v756
        %v1022 = vmul.f32 %v982, %v763
        %v1023 = vmul.f32 %v983, %v770
        %vm1024 = vcmp.eq.f32.partialorder %v992, 0.0
        %vm1025 = vcmp.eq.f32.partialorder %v993, 0.0
        %vm1026 = vcmp.eq.f32.partialorder %v994, 0.0
        %vm1027 = vcmp.eq.f32.partialorder %v995, 0.0
        %v1028 = vsel %vm1024, %v1016, 0.0
        %v1029 = vsel %vm1025, %v1017, 0.0
        %v1030 = vsel %vm1026, %v1018, 0.0
        %v1031 = vsel %vm1027, %v1019, 0.0
        %vm1032 = vcmp.eq.f32.partialorder %v1008, 0.0
        %vm1033 = vcmp.eq.f32.partialorder %v1009, 0.0
        %vm1034 = vcmp.eq.f32.partialorder %v1010, 0.0
        %vm1035 = vcmp.eq.f32.partialorder %v1011, 0.0
        %v1036 = vsel %vm1032, %v1020, 0.0
        %v1037 = vsel %vm1033, %v1021, 0.0
        %v1038 = vsel %vm1034, %v1022, 0.0
        %v1039 = vsel %vm1035, %v1023, 0.0
        %v1040 = vadd.f32 %v1028, %v1036
        %v1041 = vadd.f32 %v1029, %v1037
        %v1042 = vadd.f32 %v1030, %v1038
        %v1043 = vadd.f32 %v1031, %v1039
        %v1044 = vpack.c.bf16 %v1042, %v1040
        %v1045 = vpack.c.bf16 %v1043, %v1041
        %v1046 = vld [vmem:[#allocation7] sm:$0xf]
        %v1047 = vld [vmem:[#allocation7 + $0x4] sm:$0xf]
        %v1048 = vld [vmem:[#allocation7 + $0x8] sm:$0xf]
        %v1049 = vld [vmem:[#allocation7 + $0xc] sm:$0xf]
        %v1050 = vld [vmem:[#allocation7 + $0x10] sm:$0xf]
        %v1051 = vld [vmem:[#allocation7 + $0x14] sm:$0xf]
        %v1052 = vld [vmem:[#allocation7 + $0x18] sm:$0xf]
        %v1053 = vld [vmem:[#allocation7 + $0x1c] sm:$0xf]
        %v1054 = vld [vmem:[#allocation7 + $0x20] sm:$0xf]
        %v1055 = vld [vmem:[#allocation7 + $0x24] sm:$0xf]
        %v1056 = vld [vmem:[#allocation7 + $0x28] sm:$0xf]
        %v1057 = vld [vmem:[#allocation7 + $0x2c] sm:$0xf]
        %v1058 = vld [vmem:[#allocation7 + $0x30] sm:$0xf]
        %v1059 = vld [vmem:[#allocation7 + $0x34] sm:$0xf]
        %v1060 = vld [vmem:[#allocation7 + $0x38] sm:$0xf]
        %v1061 = vld [vmem:[#allocation7 + $0x3c] sm:$0xf]
        %v1062 = vld [vmem:[#allocation7 + $0x40] sm:$0xf]
        %v1063 = vld [vmem:[#allocation7 + $0x44] sm:$0xf]
        %v1064 = vld [vmem:[#allocation7 + $0x48] sm:$0xf]
        %v1065 = vld [vmem:[#allocation7 + $0x4c] sm:$0xf]
        %v1066 = vld [vmem:[#allocation7 + $0x50] sm:$0xf]
        %v1067 = vld [vmem:[#allocation7 + $0x54] sm:$0xf]
        %v1068 = vld [vmem:[#allocation7 + $0x58] sm:$0xf]
        %v1069 = vld [vmem:[#allocation7 + $0x5c] sm:$0xf]
        %v1070 = vld [vmem:[#allocation7 + $0x60] sm:$0xf]
        %v1071 = vld [vmem:[#allocation7 + $0x64] sm:$0xf]
        %v1072 = vld [vmem:[#allocation7 + $0x68] sm:$0xf]
        %v1073 = vld [vmem:[#allocation7 + $0x6c] sm:$0xf]
        %v1074 = vld [vmem:[#allocation7 + $0x70] sm:$0xf]
        %v1075 = vld [vmem:[#allocation7 + $0x74] sm:$0xf]
        %v1076 = vld [vmem:[#allocation7 + $0x78] sm:$0xf]
        %v1077 = vld [vmem:[#allocation7 + $0x7c] sm:$0xf]
        %vm1078 = vcmp.eq.f32.partialorder %v992, 1.0
        %vm1079 = vcmp.eq.f32.partialorder %v993, 1.0
        %vm1080 = vcmp.eq.f32.partialorder %v994, 1.0
        %vm1081 = vcmp.eq.f32.partialorder %v995, 1.0
        %v1082 = vsel %vm1078, %v1016, 0.0
        %v1083 = vsel %vm1079, %v1017, 0.0
        %v1084 = vsel %vm1080, %v1018, 0.0
        %v1085 = vsel %vm1081, %v1019, 0.0
        %vm1086 = vcmp.eq.f32.partialorder %v1008, 1.0
        %vm1087 = vcmp.eq.f32.partialorder %v1009, 1.0
        %vm1088 = vcmp.eq.f32.partialorder %v1010, 1.0
        %vm1089 = vcmp.eq.f32.partialorder %v1011, 1.0
        %v1090 = vsel %vm1086, %v1020, 0.0
        %v1091 = vsel %vm1087, %v1021, 0.0
        %v1092 = vsel %vm1088, %v1022, 0.0
        %v1093 = vsel %vm1089, %v1023, 0.0
        %v1094 = vadd.f32 %v1082, %v1090
        %v1095 = vadd.f32 %v1083, %v1091
        %v1096 = vadd.f32 %v1084, %v1092
        %v1097 = vadd.f32 %v1085, %v1093
        %v1098 = vpack.c.bf16 %v1096, %v1094
        %v1099 = vpack.c.bf16 %v1097, %v1095
        %v1100 = vld [vmem:[#allocation7 + $0x80] sm:$0xf]
        %v1101 = vld [vmem:[#allocation7 + $0x84] sm:$0xf]
        %v1102 = vld [vmem:[#allocation7 + $0x88] sm:$0xf]
        %v1103 = vld [vmem:[#allocation7 + $0x8c] sm:$0xf]
        %v1104 = vld [vmem:[#allocation7 + $0x90] sm:$0xf]
        %v1105 = vld [vmem:[#allocation7 + $0x94] sm:$0xf]
        %v1106 = vld [vmem:[#allocation7 + $0x98] sm:$0xf]
        %v1107 = vld [vmem:[#allocation7 + $0x9c] sm:$0xf]
        %v1108 = vld [vmem:[#allocation7 + $0xa0] sm:$0xf]
        %v1109 = vld [vmem:[#allocation7 + $0xa4] sm:$0xf]
        %v1110 = vld [vmem:[#allocation7 + $0xa8] sm:$0xf]
        %v1111 = vld [vmem:[#allocation7 + $0xac] sm:$0xf]
        %v1112 = vld [vmem:[#allocation7 + $0xb0] sm:$0xf]
        %v1113 = vld [vmem:[#allocation7 + $0xb4] sm:$0xf]
        %v1114 = vld [vmem:[#allocation7 + $0xb8] sm:$0xf]
        %v1115 = vld [vmem:[#allocation7 + $0xbc] sm:$0xf]
        %v1116 = vld [vmem:[#allocation7 + $0xc0] sm:$0xf]
        %v1117 = vld [vmem:[#allocation7 + $0xc4] sm:$0xf]
        %v1118 = vld [vmem:[#allocation7 + $0xc8] sm:$0xf]
        %v1119 = vld [vmem:[#allocation7 + $0xcc] sm:$0xf]
        %v1120 = vld [vmem:[#allocation7 + $0xd0] sm:$0xf]
        %v1121 = vld [vmem:[#allocation7 + $0xd4] sm:$0xf]
        %v1122 = vld [vmem:[#allocation7 + $0xd8] sm:$0xf]
        %v1123 = vld [vmem:[#allocation7 + $0xdc] sm:$0xf]
        %v1124 = vld [vmem:[#allocation7 + $0xe0] sm:$0xf]
        %v1125 = vld [vmem:[#allocation7 + $0xe4] sm:$0xf]
        %v1126 = vld [vmem:[#allocation7 + $0xe8] sm:$0xf]
        %v1127 = vld [vmem:[#allocation7 + $0xec] sm:$0xf]
        %v1128 = vld [vmem:[#allocation7 + $0xf0] sm:$0xf]
        %v1129 = vld [vmem:[#allocation7 + $0xf4] sm:$0xf]
        %v1130 = vld [vmem:[#allocation7 + $0xf8] sm:$0xf]
        %v1131 = vld [vmem:[#allocation7 + $0xfc] sm:$0xf]
        %v1164 = vunpack.c.l.b16 %v1100
        %v1165 = vunpack.c.l.b16 %v1101
        %v1166 = vunpack.c.l.b16 %v1102
        %v1167 = vunpack.c.l.b16 %v1103
        %v1168 = vunpack.c.l.b16 %v1104
        %v1169 = vunpack.c.l.b16 %v1105
        %v1170 = vunpack.c.l.b16 %v1106
        %v1171 = vunpack.c.l.b16 %v1107
        %v1172 = vunpack.c.l.b16 %v1108
        %v1173 = vunpack.c.l.b16 %v1109
        %v1174 = vunpack.c.l.b16 %v1110
        %v1175 = vunpack.c.l.b16 %v1111
        %v1176 = vunpack.c.l.b16 %v1112
        %v1177 = vunpack.c.l.b16 %v1113
        %v1178 = vunpack.c.l.b16 %v1114
        %v1179 = vunpack.c.l.b16 %v1115
        %v1180 = vunpack.c.l.b16 %v1116
        %v1181 = vunpack.c.l.b16 %v1117
        %v1182 = vunpack.c.l.b16 %v1118
        %v1183 = vunpack.c.l.b16 %v1119
        %v1184 = vunpack.c.l.b16 %v1120
        %v1185 = vunpack.c.l.b16 %v1121
        %v1186 = vunpack.c.l.b16 %v1122
        %v1187 = vunpack.c.l.b16 %v1123
        %v1188 = vunpack.c.l.b16 %v1124
        %v1189 = vunpack.c.l.b16 %v1125
        %v1190 = vunpack.c.l.b16 %v1126
        %v1191 = vunpack.c.l.b16 %v1127
        %v1192 = vunpack.c.l.b16 %v1128
        %v1193 = vunpack.c.l.b16 %v1129
        %v1194 = vunpack.c.l.b16 %v1130
        %v1195 = vunpack.c.l.b16 %v1131
        %v1196 = vpack.c.b16 %v1165, %v1164
        %v1197 = vpack.c.b16 %v1167, %v1166
        %v1198 = vpack.c.b16 %v1169, %v1168
        %v1199 = vpack.c.b16 %v1171, %v1170
        %v1200 = vpack.c.b16 %v1173, %v1172
        %v1201 = vpack.c.b16 %v1175, %v1174
        %v1202 = vpack.c.b16 %v1177, %v1176
        %v1203 = vpack.c.b16 %v1179, %v1178
        %v1204 = vpack.c.b16 %v1181, %v1180
        %v1205 = vpack.c.b16 %v1183, %v1182
        %v1206 = vpack.c.b16 %v1185, %v1184
        %v1207 = vpack.c.b16 %v1187, %v1186
        %v1208 = vpack.c.b16 %v1189, %v1188
        %v1209 = vpack.c.b16 %v1191, %v1190
        %v1210 = vpack.c.b16 %v1193, %v1192
        %v1211 = vpack.c.b16 %v1195, %v1194
        %1228 = vmatprep.subr.bf16.mxu0 0
        %1229 = vmatpush1.bf16.msra.mxu0 %v1196
        %1230 = vmatprep.subr.bf16.mxu0 0
        %1231 = vmatpush1.bf16.msra.mxu0 %v1197
        %1232 = vmatprep.subr.bf16.mxu0 0
        %1233 = vmatpush1.bf16.msra.mxu0 %v1198
        %1234 = vmatprep.subr.bf16.mxu0 0
        %1235 = vmatpush1.bf16.msra.mxu0 %v1199
        %1236 = vmatprep.subr.bf16.mxu0 0
        %1237 = vmatpush1.bf16.msra.mxu0 %v1200
        %1238 = vmatprep.subr.bf16.mxu0 0
        %1239 = vmatpush1.bf16.msra.mxu0 %v1201
        %1240 = vmatprep.subr.bf16.mxu0 0
        %1241 = vmatpush1.bf16.msra.mxu0 %v1202
        %1242 = vmatprep.subr.bf16.mxu0 0
        %1243 = vmatpush1.bf16.msra.mxu0 %v1203
        %1244 = vmatprep.subr.bf16.mxu0 0
        %1245 = vmatpush1.bf16.msra.mxu0 %v1204
        %1246 = vmatprep.subr.bf16.mxu0 0
        %1247 = vmatpush1.bf16.msra.mxu0 %v1205
        %1248 = vmatprep.subr.bf16.mxu0 0
        %1249 = vmatpush1.bf16.msra.mxu0 %v1206
        %1250 = vmatprep.subr.bf16.mxu0 0
        %1251 = vmatpush1.bf16.msra.mxu0 %v1207
        %1252 = vmatprep.subr.bf16.mxu0 0
        %1253 = vmatpush1.bf16.msra.mxu0 %v1208
        %1254 = vmatprep.subr.bf16.mxu0 0
        %1255 = vmatpush1.bf16.msra.mxu0 %v1209
        %1256 = vmatprep.subr.bf16.mxu0 0
        %1257 = vmatpush1.bf16.msra.mxu0 %v1210
        %1258 = vmatprep.subr.bf16.mxu0 0
        %1259 = vmatpush1.bf16.msra.mxu0 %v1211
        %1260 = vmatprep.mubr.bf16.mxu0 %v1099
        %1261 = vmatmul.mubr.bf16.gmra.mrb[0].mxu0 %v1098
        %v1262 = vpop.f32.mrb[0].mxu0
        %v1263 = vadd.f32 0.0, %v1262
        %v1264 = vpop.f32.mrb[0].mxu0
        %v1265 = vpop.f32.mrb[0].mxu0
        %v1266 = vadd.f32 0.0, %v1265
        %v1267 = vpop.f32.mrb[0].mxu0
        %1268 = vdwg.mxu0
        %v1301 = vunpack.c.l.b16 %v1046
        %v1302 = vunpack.c.l.b16 %v1047
        %v1303 = vunpack.c.l.b16 %v1048
        %v1304 = vunpack.c.l.b16 %v1049
        %v1305 = vunpack.c.l.b16 %v1050
        %v1306 = vunpack.c.l.b16 %v1051
        %v1307 = vunpack.c.l.b16 %v1052
        %v1308 = vunpack.c.l.b16 %v1053
        %v1309 = vunpack.c.l.b16 %v1054
        %v1310 = vunpack.c.l.b16 %v1055
        %v1311 = vunpack.c.l.b16 %v1056
        %v1312 = vunpack.c.l.b16 %v1057
        %v1313 = vunpack.c.l.b16 %v1058
        %v1314 = vunpack.c.l.b16 %v1059
        %v1315 = vunpack.c.l.b16 %v1060
        %v1316 = vunpack.c.l.b16 %v1061
        %v1317 = vunpack.c.l.b16 %v1062
        %v1318 = vunpack.c.l.b16 %v1063
        %v1319 = vunpack.c.l.b16 %v1064
        %v1320 = vunpack.c.l.b16 %v1065
        %v1321 = vunpack.c.l.b16 %v1066
        %v1322 = vunpack.c.l.b16 %v1067
        %v1323 = vunpack.c.l.b16 %v1068
        %v1324 = vunpack.c.l.b16 %v1069
        %v1325 = vunpack.c.l.b16 %v1070
        %v1326 = vunpack.c.l.b16 %v1071
        %v1327 = vunpack.c.l.b16 %v1072
        %v1328 = vunpack.c.l.b16 %v1073
        %v1329 = vunpack.c.l.b16 %v1074
        %v1330 = vunpack.c.l.b16 %v1075
        %v1331 = vunpack.c.l.b16 %v1076
        %v1332 = vunpack.c.l.b16 %v1077
        %v1333 = vpack.c.b16 %v1302, %v1301
        %v1334 = vpack.c.b16 %v1304, %v1303
        %v1335 = vpack.c.b16 %v1306, %v1305
        %v1336 = vpack.c.b16 %v1308, %v1307
        %v1337 = vpack.c.b16 %v1310, %v1309
        %v1338 = vpack.c.b16 %v1312, %v1311
        %v1339 = vpack.c.b16 %v1314, %v1313
        %v1340 = vpack.c.b16 %v1316, %v1315
        %v1341 = vpack.c.b16 %v1318, %v1317
        %v1342 = vpack.c.b16 %v1320, %v1319
        %v1343 = vpack.c.b16 %v1322, %v1321
        %v1344 = vpack.c.b16 %v1324, %v1323
        %v1345 = vpack.c.b16 %v1326, %v1325
        %v1346 = vpack.c.b16 %v1328, %v1327
        %v1347 = vpack.c.b16 %v1330, %v1329
        %v1348 = vpack.c.b16 %v1332, %v1331
        %1365 = vmatprep.subr.bf16.mxu0 0
        %1366 = vmatpush1.bf16.msra.mxu0 %v1333
        %1367 = vmatprep.subr.bf16.mxu0 0
        %1368 = vmatpush1.bf16.msra.mxu0 %v1334
        %1369 = vmatprep.subr.bf16.mxu0 0
        %1370 = vmatpush1.bf16.msra.mxu0 %v1335
        %1371 = vmatprep.subr.bf16.mxu0 0
        %1372 = vmatpush1.bf16.msra.mxu0 %v1336
        %1373 = vmatprep.subr.bf16.mxu0 0
        %1374 = vmatpush1.bf16.msra.mxu0 %v1337
        %1375 = vmatprep.subr.bf16.mxu0 0
        %1376 = vmatpush1.bf16.msra.mxu0 %v1338
        %1377 = vmatprep.subr.bf16.mxu0 0
        %1378 = vmatpush1.bf16.msra.mxu0 %v1339
        %1379 = vmatprep.subr.bf16.mxu0 0
        %1380 = vmatpush1.bf16.msra.mxu0 %v1340
        %1381 = vmatprep.subr.bf16.mxu0 0
        %1382 = vmatpush1.bf16.msra.mxu0 %v1341
        %1383 = vmatprep.subr.bf16.mxu0 0
        %1384 = vmatpush1.bf16.msra.mxu0 %v1342
        %1385 = vmatprep.subr.bf16.mxu0 0
        %1386 = vmatpush1.bf16.msra.mxu0 %v1343
        %1387 = vmatprep.subr.bf16.mxu0 0
        %1388 = vmatpush1.bf16.msra.mxu0 %v1344
        %1389 = vmatprep.subr.bf16.mxu0 0
        %1390 = vmatpush1.bf16.msra.mxu0 %v1345
        %1391 = vmatprep.subr.bf16.mxu0 0
        %1392 = vmatpush1.bf16.msra.mxu0 %v1346
        %1393 = vmatprep.subr.bf16.mxu0 0
        %1394 = vmatpush1.bf16.msra.mxu0 %v1347
        %1395 = vmatprep.subr.bf16.mxu0 0
        %1396 = vmatpush1.bf16.msra.mxu0 %v1348
        %1397 = vmatprep.mubr.bf16.mxu0 %v1045
        %1398 = vmatmul.mubr.bf16.gmra.mrb[0].mxu0 %v1044
        %v1399 = vpop.f32.mrb[0].mxu0
        %v1400 = vadd.f32 %v1263, %v1399
        %v1401 = vpop.f32.mrb[0].mxu0
        %v1402 = vpop.f32.mrb[0].mxu0
        %v1403 = vadd.f32 %v1266, %v1402
        %v1404 = vpop.f32.mrb[0].mxu0
        %1405 = vdwg.mxu0
        %vm1406 = vcmp.eq.f32.partialorder %v992, 2.0
        %vm1407 = vcmp.eq.f32.partialorder %v993, 2.0
        %vm1408 = vcmp.eq.f32.partialorder %v994, 2.0
        %vm1409 = vcmp.eq.f32.partialorder %v995, 2.0
        %v1410 = vsel %vm1406, %v1016, 0.0
        %v1411 = vsel %vm1407, %v1017, 0.0
        %v1412 = vsel %vm1408, %v1018, 0.0
        %v1413 = vsel %vm1409, %v1019, 0.0
        %vm1414 = vcmp.eq.f32.partialorder %v1008, 2.0
        %vm1415 = vcmp.eq.f32.partialorder %v1009, 2.0
        %vm1416 = vcmp.eq.f32.partialorder %v1010, 2.0
        %vm1417 = vcmp.eq.f32.partialorder %v1011, 2.0
        %v1418 = vsel %vm1414, %v1020, 0.0
        %v1419 = vsel %vm1415, %v1021, 0.0
        %v1420 = vsel %vm1416, %v1022, 0.0
        %v1421 = vsel %vm1417, %v1023, 0.0
        %v1422 = vadd.f32 %v1410, %v1418
        %v1423 = vadd.f32 %v1411, %v1419
        %v1424 = vadd.f32 %v1412, %v1420
        %v1425 = vadd.f32 %v1413, %v1421
        %v1426 = vpack.c.bf16 %v1424, %v1422
        %v1427 = vpack.c.bf16 %v1425, %v1423
        %v1428 = vld [vmem:[#allocation7 + $0x100] sm:$0xf]
        %v1429 = vld [vmem:[#allocation7 + $0x104] sm:$0xf]
        %v1430 = vld [vmem:[#allocation7 + $0x108] sm:$0xf]
        %v1431 = vld [vmem:[#allocation7 + $0x10c] sm:$0xf]
        %v1432 = vld [vmem:[#allocation7 + $0x110] sm:$0xf]
        %v1433 = vld [vmem:[#allocation7 + $0x114] sm:$0xf]
        %v1434 = vld [vmem:[#allocation7 + $0x118] sm:$0xf]
        %v1435 = vld [vmem:[#allocation7 + $0x11c] sm:$0xf]
        %v1436 = vld [vmem:[#allocation7 + $0x120] sm:$0xf]
        %v1437 = vld [vmem:[#allocation7 + $0x124] sm:$0xf]
        %v1438 = vld [vmem:[#allocation7 + $0x128] sm:$0xf]
        %v1439 = vld [vmem:[#allocation7 + $0x12c] sm:$0xf]
        %v1440 = vld [vmem:[#allocation7 + $0x130] sm:$0xf]
        %v1441 = vld [vmem:[#allocation7 + $0x134] sm:$0xf]
        %v1442 = vld [vmem:[#allocation7 + $0x138] sm:$0xf]
        %v1443 = vld [vmem:[#allocation7 + $0x13c] sm:$0xf]
        %v1444 = vld [vmem:[#allocation7 + $0x140] sm:$0xf]
        %v1445 = vld [vmem:[#allocation7 + $0x144] sm:$0xf]
        %v1446 = vld [vmem:[#allocation7 + $0x148] sm:$0xf]
        %v1447 = vld [vmem:[#allocation7 + $0x14c] sm:$0xf]
        %v1448 = vld [vmem:[#allocation7 + $0x150] sm:$0xf]
        %v1449 = vld [vmem:[#allocation7 + $0x154] sm:$0xf]
        %v1450 = vld [vmem:[#allocation7 + $0x158] sm:$0xf]
        %v1451 = vld [vmem:[#allocation7 + $0x15c] sm:$0xf]
        %v1452 = vld [vmem:[#allocation7 + $0x160] sm:$0xf]
        %v1453 = vld [vmem:[#allocation7 + $0x164] sm:$0xf]
        %v1454 = vld [vmem:[#allocation7 + $0x168] sm:$0xf]
        %v1455 = vld [vmem:[#allocation7 + $0x16c] sm:$0xf]
        %v1456 = vld [vmem:[#allocation7 + $0x170] sm:$0xf]
        %v1457 = vld [vmem:[#allocation7 + $0x174] sm:$0xf]
        %v1458 = vld [vmem:[#allocation7 + $0x178] sm:$0xf]
        %v1459 = vld [vmem:[#allocation7 + $0x17c] sm:$0xf]
        %v1492 = vunpack.c.l.b16 %v1428
        %v1493 = vunpack.c.l.b16 %v1429
        %v1494 = vunpack.c.l.b16 %v1430
        %v1495 = vunpack.c.l.b16 %v1431
        %v1496 = vunpack.c.l.b16 %v1432
        %v1497 = vunpack.c.l.b16 %v1433
        %v1498 = vunpack.c.l.b16 %v1434
        %v1499 = vunpack.c.l.b16 %v1435
        %v1500 = vunpack.c.l.b16 %v1436
        %v1501 = vunpack.c.l.b16 %v1437
        %v1502 = vunpack.c.l.b16 %v1438
        %v1503 = vunpack.c.l.b16 %v1439
        %v1504 = vunpack.c.l.b16 %v1440
        %v1505 = vunpack.c.l.b16 %v1441
        %v1506 = vunpack.c.l.b16 %v1442
        %v1507 = vunpack.c.l.b16 %v1443
        %v1508 = vunpack.c.l.b16 %v1444
        %v1509 = vunpack.c.l.b16 %v1445
        %v1510 = vunpack.c.l.b16 %v1446
        %v1511 = vunpack.c.l.b16 %v1447
        %v1512 = vunpack.c.l.b16 %v1448
        %v1513 = vunpack.c.l.b16 %v1449
        %v1514 = vunpack.c.l.b16 %v1450
        %v1515 = vunpack.c.l.b16 %v1451
        %v1516 = vunpack.c.l.b16 %v1452
        %v1517 = vunpack.c.l.b16 %v1453
        %v1518 = vunpack.c.l.b16 %v1454
        %v1519 = vunpack.c.l.b16 %v1455
        %v1520 = vunpack.c.l.b16 %v1456
        %v1521 = vunpack.c.l.b16 %v1457
        %v1522 = vunpack.c.l.b16 %v1458
        %v1523 = vunpack.c.l.b16 %v1459
        %v1524 = vpack.c.b16 %v1493, %v1492
        %v1525 = vpack.c.b16 %v1495, %v1494
        %v1526 = vpack.c.b16 %v1497, %v1496
        %v1527 = vpack.c.b16 %v1499, %v1498
        %v1528 = vpack.c.b16 %v1501, %v1500
        %v1529 = vpack.c.b16 %v1503, %v1502
        %v1530 = vpack.c.b16 %v1505, %v1504
        %v1531 = vpack.c.b16 %v1507, %v1506
        %v1532 = vpack.c.b16 %v1509, %v1508
        %v1533 = vpack.c.b16 %v1511, %v1510
        %v1534 = vpack.c.b16 %v1513, %v1512
        %v1535 = vpack.c.b16 %v1515, %v1514
        %v1536 = vpack.c.b16 %v1517, %v1516
        %v1537 = vpack.c.b16 %v1519, %v1518
        %v1538 = vpack.c.b16 %v1521, %v1520
        %v1539 = vpack.c.b16 %v1523, %v1522
        %1556 = vmatprep.subr.bf16.mxu0 0
        %1557 = vmatpush1.bf16.msra.mxu0 %v1524
        %1558 = vmatprep.subr.bf16.mxu0 0
        %1559 = vmatpush1.bf16.msra.mxu0 %v1525
        %1560 = vmatprep.subr.bf16.mxu0 0
        %1561 = vmatpush1.bf16.msra.mxu0 %v1526
        %1562 = vmatprep.subr.bf16.mxu0 0
        %1563 = vmatpush1.bf16.msra.mxu0 %v1527
        %1564 = vmatprep.subr.bf16.mxu0 0
        %1565 = vmatpush1.bf16.msra.mxu0 %v1528
        %1566 = vmatprep.subr.bf16.mxu0 0
        %1567 = vmatpush1.bf16.msra.mxu0 %v1529
        %1568 = vmatprep.subr.bf16.mxu0 0
        %1569 = vmatpush1.bf16.msra.mxu0 %v1530
        %1570 = vmatprep.subr.bf16.mxu0 0
        %1571 = vmatpush1.bf16.msra.mxu0 %v1531
        %1572 = vmatprep.subr.bf16.mxu0 0
        %1573 = vmatpush1.bf16.msra.mxu0 %v1532
        %1574 = vmatprep.subr.bf16.mxu0 0
        %1575 = vmatpush1.bf16.msra.mxu0 %v1533
        %1576 = vmatprep.subr.bf16.mxu0 0
        %1577 = vmatpush1.bf16.msra.mxu0 %v1534
        %1578 = vmatprep.subr.bf16.mxu0 0
        %1579 = vmatpush1.bf16.msra.mxu0 %v1535
        %1580 = vmatprep.subr.bf16.mxu0 0
        %1581 = vmatpush1.bf16.msra.mxu0 %v1536
        %1582 = vmatprep.subr.bf16.mxu0 0
        %1583 = vmatpush1.bf16.msra.mxu0 %v1537
        %1584 = vmatprep.subr.bf16.mxu0 0
        %1585 = vmatpush1.bf16.msra.mxu0 %v1538
        %1586 = vmatprep.subr.bf16.mxu0 0
        %1587 = vmatpush1.bf16.msra.mxu0 %v1539
        %1588 = vmatprep.mubr.bf16.mxu0 %v1427
        %1589 = vmatmul.mubr.bf16.gmra.mrb[0].mxu0 %v1426
        %v1590 = vpop.f32.mrb[0].mxu0
        %v1591 = vadd.f32 0.0, %v1590
        %v1592 = vpop.f32.mrb[0].mxu0
        %v1593 = vpop.f32.mrb[0].mxu0
        %v1594 = vadd.f32 0.0, %v1593
        %v1595 = vpop.f32.mrb[0].mxu0
        %1596 = vdwg.mxu0
        %v1597 = vadd.f32 %v1400, %v1591
        %v1598 = vadd.f32 %v1403, %v1594
        %vm1599 = vcmp.eq.f32.partialorder %v992, 3.0
        %vm1600 = vcmp.eq.f32.partialorder %v993, 3.0
        %vm1601 = vcmp.eq.f32.partialorder %v994, 3.0
        %vm1602 = vcmp.eq.f32.partialorder %v995, 3.0
        %v1603 = vsel %vm1599, %v1016, 0.0
        %v1604 = vsel %vm1600, %v1017, 0.0
        %v1605 = vsel %vm1601, %v1018, 0.0
        %v1606 = vsel %vm1602, %v1019, 0.0
        %vm1607 = vcmp.eq.f32.partialorder %v1008, 3.0
        %vm1608 = vcmp.eq.f32.partialorder %v1009, 3.0
        %vm1609 = vcmp.eq.f32.partialorder %v1010, 3.0
        %vm1610 = vcmp.eq.f32.partialorder %v1011, 3.0
        %v1611 = vsel %vm1607, %v1020, 0.0
        %v1612 = vsel %vm1608, %v1021, 0.0
        %v1613 = vsel %vm1609, %v1022, 0.0
        %v1614 = vsel %vm1610, %v1023, 0.0
        %v1615 = vadd.f32 %v1603, %v1611
        %v1616 = vadd.f32 %v1604, %v1612
        %v1617 = vadd.f32 %v1605, %v1613
        %v1618 = vadd.f32 %v1606, %v1614
        %v1619 = vpack.c.bf16 %v1617, %v1615
        %v1620 = vpack.c.bf16 %v1618, %v1616
        %v1621 = vld [vmem:[#allocation7 + $0x180] sm:$0xf]
        %v1622 = vld [vmem:[#allocation7 + $0x184] sm:$0xf]
        %v1623 = vld [vmem:[#allocation7 + $0x188] sm:$0xf]
        %v1624 = vld [vmem:[#allocation7 + $0x18c] sm:$0xf]
        %v1625 = vld [vmem:[#allocation7 + $0x190] sm:$0xf]
        %v1626 = vld [vmem:[#allocation7 + $0x194] sm:$0xf]
        %v1627 = vld [vmem:[#allocation7 + $0x198] sm:$0xf]
        %v1628 = vld [vmem:[#allocation7 + $0x19c] sm:$0xf]
        %v1629 = vld [vmem:[#allocation7 + $0x1a0] sm:$0xf]
        %v1630 = vld [vmem:[#allocation7 + $0x1a4] sm:$0xf]
        %v1631 = vld [vmem:[#allocation7 + $0x1a8] sm:$0xf]
        %v1632 = vld [vmem:[#allocation7 + $0x1ac] sm:$0xf]
        %v1633 = vld [vmem:[#allocation7 + $0x1b0] sm:$0xf]
        %v1634 = vld [vmem:[#allocation7 + $0x1b4] sm:$0xf]
        %v1635 = vld [vmem:[#allocation7 + $0x1b8] sm:$0xf]
        %v1636 = vld [vmem:[#allocation7 + $0x1bc] sm:$0xf]
        %v1637 = vld [vmem:[#allocation7 + $0x1c0] sm:$0xf]
        %v1638 = vld [vmem:[#allocation7 + $0x1c4] sm:$0xf]
        %v1639 = vld [vmem:[#allocation7 + $0x1c8] sm:$0xf]
        %v1640 = vld [vmem:[#allocation7 + $0x1cc] sm:$0xf]
        %v1641 = vld [vmem:[#allocation7 + $0x1d0] sm:$0xf]
        %v1642 = vld [vmem:[#allocation7 + $0x1d4] sm:$0xf]
        %v1643 = vld [vmem:[#allocation7 + $0x1d8] sm:$0xf]
        %v1644 = vld [vmem:[#allocation7 + $0x1dc] sm:$0xf]
        %v1645 = vld [vmem:[#allocation7 + $0x1e0] sm:$0xf]
        %v1646 = vld [vmem:[#allocation7 + $0x1e4] sm:$0xf]
        %v1647 = vld [vmem:[#allocation7 + $0x1e8] sm:$0xf]
        %v1648 = vld [vmem:[#allocation7 + $0x1ec] sm:$0xf]
        %v1649 = vld [vmem:[#allocation7 + $0x1f0] sm:$0xf]
        %v1650 = vld [vmem:[#allocation7 + $0x1f4] sm:$0xf]
        %v1651 = vld [vmem:[#allocation7 + $0x1f8] sm:$0xf]
        %v1652 = vld [vmem:[#allocation7 + $0x1fc] sm:$0xf]
        %v1685 = vunpack.c.l.b16 %v1621
        %v1686 = vunpack.c.l.b16 %v1622
        %v1687 = vunpack.c.l.b16 %v1623
        %v1688 = vunpack.c.l.b16 %v1624
        %v1689 = vunpack.c.l.b16 %v1625
        %v1690 = vunpack.c.l.b16 %v1626
        %v1691 = vunpack.c.l.b16 %v1627
        %v1692 = vunpack.c.l.b16 %v1628
        %v1693 = vunpack.c.l.b16 %v1629
        %v1694 = vunpack.c.l.b16 %v1630
        %v1695 = vunpack.c.l.b16 %v1631
        %v1696 = vunpack.c.l.b16 %v1632
        %v1697 = vunpack.c.l.b16 %v1633
        %v1698 = vunpack.c.l.b16 %v1634
        %v1699 = vunpack.c.l.b16 %v1635
        %v1700 = vunpack.c.l.b16 %v1636
        %v1701 = vunpack.c.l.b16 %v1637
        %v1702 = vunpack.c.l.b16 %v1638
        %v1703 = vunpack.c.l.b16 %v1639
        %v1704 = vunpack.c.l.b16 %v1640
        %v1705 = vunpack.c.l.b16 %v1641
        %v1706 = vunpack.c.l.b16 %v1642
        %v1707 = vunpack.c.l.b16 %v1643
        %v1708 = vunpack.c.l.b16 %v1644
        %v1709 = vunpack.c.l.b16 %v1645
        %v1710 = vunpack.c.l.b16 %v1646
        %v1711 = vunpack.c.l.b16 %v1647
        %v1712 = vunpack.c.l.b16 %v1648
        %v1713 = vunpack.c.l.b16 %v1649
        %v1714 = vunpack.c.l.b16 %v1650
        %v1715 = vunpack.c.l.b16 %v1651
        %v1716 = vunpack.c.l.b16 %v1652
        %v1717 = vpack.c.b16 %v1686, %v1685
        %v1718 = vpack.c.b16 %v1688, %v1687
        %v1719 = vpack.c.b16 %v1690, %v1689
        %v1720 = vpack.c.b16 %v1692, %v1691
        %v1721 = vpack.c.b16 %v1694, %v1693
        %v1722 = vpack.c.b16 %v1696, %v1695
        %v1723 = vpack.c.b16 %v1698, %v1697
        %v1724 = vpack.c.b16 %v1700, %v1699
        %v1725 = vpack.c.b16 %v1702, %v1701
        %v1726 = vpack.c.b16 %v1704, %v1703
        %v1727 = vpack.c.b16 %v1706, %v1705
        %v1728 = vpack.c.b16 %v1708, %v1707
        %v1729 = vpack.c.b16 %v1710, %v1709
        %v1730 = vpack.c.b16 %v1712, %v1711
        %v1731 = vpack.c.b16 %v1714, %v1713
        %v1732 = vpack.c.b16 %v1716, %v1715
        %1749 = vmatprep.subr.bf16.mxu0 0
        %1750 = vmatpush1.bf16.msra.mxu0 %v1717
        %1751 = vmatprep.subr.bf16.mxu0 0
        %1752 = vmatpush1.bf16.msra.mxu0 %v1718
        %1753 = vmatprep.subr.bf16.mxu0 0
        %1754 = vmatpush1.bf16.msra.mxu0 %v1719
        %1755 = vmatprep.subr.bf16.mxu0 0
        %1756 = vmatpush1.bf16.msra.mxu0 %v1720
        %1757 = vmatprep.subr.bf16.mxu0 0
        %1758 = vmatpush1.bf16.msra.mxu0 %v1721
        %1759 = vmatprep.subr.bf16.mxu0 0
        %1760 = vmatpush1.bf16.msra.mxu0 %v1722
        %1761 = vmatprep.subr.bf16.mxu0 0
        %1762 = vmatpush1.bf16.msra.mxu0 %v1723
        %1763 = vmatprep.subr.bf16.mxu0 0
        %1764 = vmatpush1.bf16.msra.mxu0 %v1724
        %1765 = vmatprep.subr.bf16.mxu0 0
        %1766 = vmatpush1.bf16.msra.mxu0 %v1725
        %1767 = vmatprep.subr.bf16.mxu0 0
        %1768 = vmatpush1.bf16.msra.mxu0 %v1726
        %1769 = vmatprep.subr.bf16.mxu0 0
        %1770 = vmatpush1.bf16.msra.mxu0 %v1727
        %1771 = vmatprep.subr.bf16.mxu0 0
        %1772 = vmatpush1.bf16.msra.mxu0 %v1728
        %1773 = vmatprep.subr.bf16.mxu0 0
        %1774 = vmatpush1.bf16.msra.mxu0 %v1729
        %1775 = vmatprep.subr.bf16.mxu0 0
        %1776 = vmatpush1.bf16.msra.mxu0 %v1730
        %1777 = vmatprep.subr.bf16.mxu0 0
        %1778 = vmatpush1.bf16.msra.mxu0 %v1731
        %1779 = vmatprep.subr.bf16.mxu0 0
        %1780 = vmatpush1.bf16.msra.mxu0 %v1732
        %1781 = vmatprep.mubr.bf16.mxu0 %v1620
        %1782 = vmatmul.mubr.bf16.gmra.mrb[0].mxu0 %v1619
        %v1783 = vpop.f32.mrb[0].mxu0
        %v1784 = vadd.f32 0.0, %v1783
        %v1785 = vpop.f32.mrb[0].mxu0
        %v1786 = vpop.f32.mrb[0].mxu0
        %v1787 = vadd.f32 0.0, %v1786
        %v1788 = vpop.f32.mrb[0].mxu0
        %1789 = vdwg.mxu0
        %v1790 = vadd.f32 %v1597, %v1784
        %v1791 = vadd.f32 %v1598, %v1787
        %vm1792 = vcmp.eq.f32.partialorder %v992, 4.0
        %vm1793 = vcmp.eq.f32.partialorder %v993, 4.0
        %vm1794 = vcmp.eq.f32.partialorder %v994, 4.0
        %vm1795 = vcmp.eq.f32.partialorder %v995, 4.0
        %v1796 = vsel %vm1792, %v1016, 0.0
        %v1797 = vsel %vm1793, %v1017, 0.0
        %v1798 = vsel %vm1794, %v1018, 0.0
        %v1799 = vsel %vm1795, %v1019, 0.0
        %vm1800 = vcmp.eq.f32.partialorder %v1008, 4.0
        %vm1801 = vcmp.eq.f32.partialorder %v1009, 4.0
        %vm1802 = vcmp.eq.f32.partialorder %v1010, 4.0
        %vm1803 = vcmp.eq.f32.partialorder %v1011, 4.0
        %v1804 = vsel %vm1800, %v1020, 0.0
        %v1805 = vsel %vm1801, %v1021, 0.0
        %v1806 = vsel %vm1802, %v1022, 0.0
        %v1807 = vsel %vm1803, %v1023, 0.0
        %v1808 = vadd.f32 %v1796, %v1804
        %v1809 = vadd.f32 %v1797, %v1805
        %v1810 = vadd.f32 %v1798, %v1806
        %v1811 = vadd.f32 %v1799, %v1807
        %v1812 = vpack.c.bf16 %v1810, %v1808
        %v1813 = vpack.c.bf16 %v1811, %v1809
        %v1814 = vld [vmem:[#allocation7 + $0x200] sm:$0xf]
        %v1815 = vld [vmem:[#allocation7 + $0x204] sm:$0xf]
        %v1816 = vld [vmem:[#allocation7 + $0x208] sm:$0xf]
        %v1817 = vld [vmem:[#allocation7 + $0x20c] sm:$0xf]
        %v1818 = vld [vmem:[#allocation7 + $0x210] sm:$0xf]
        %v1819 = vld [vmem:[#allocation7 + $0x214] sm:$0xf]
        %v1820 = vld [vmem:[#allocation7 + $0x218] sm:$0xf]
        %v1821 = vld [vmem:[#allocation7 + $0x21c] sm:$0xf]
        %v1822 = vld [vmem:[#allocation7 + $0x220] sm:$0xf]
        %v1823 = vld [vmem:[#allocation7 + $0x224] sm:$0xf]
        %v1824 = vld [vmem:[#allocation7 + $0x228] sm:$0xf]
        %v1825 = vld [vmem:[#allocation7 + $0x22c] sm:$0xf]
        %v1826 = vld [vmem:[#allocation7 + $0x230] sm:$0xf]
        %v1827 = vld [vmem:[#allocation7 + $0x234] sm:$0xf]
        %v1828 = vld [vmem:[#allocation7 + $0x238] sm:$0xf]
        %v1829 = vld [vmem:[#allocation7 + $0x23c] sm:$0xf]
        %v1830 = vld [vmem:[#allocation7 + $0x240] sm:$0xf]
        %v1831 = vld [vmem:[#allocation7 + $0x244] sm:$0xf]
        %v1832 = vld [vmem:[#allocation7 + $0x248] sm:$0xf]
        %v1833 = vld [vmem:[#allocation7 + $0x24c] sm:$0xf]
        %v1834 = vld [vmem:[#allocation7 + $0x250] sm:$0xf]
        %v1835 = vld [vmem:[#allocation7 + $0x254] sm:$0xf]
        %v1836 = vld [vmem:[#allocation7 + $0x258] sm:$0xf]
        %v1837 = vld [vmem:[#allocation7 + $0x25c] sm:$0xf]
        %v1838 = vld [vmem:[#allocation7 + $0x260] sm:$0xf]
        %v1839 = vld [vmem:[#allocation7 + $0x264] sm:$0xf]
        %v1840 = vld [vmem:[#allocation7 + $0x268] sm:$0xf]
        %v1841 = vld [vmem:[#allocation7 + $0x26c] sm:$0xf]
        %v1842 = vld [vmem:[#allocation7 + $0x270] sm:$0xf]
        %v1843 = vld [vmem:[#allocation7 + $0x274] sm:$0xf]
        %v1844 = vld [vmem:[#allocation7 + $0x278] sm:$0xf]
        %v1845 = vld [vmem:[#allocation7 + $0x27c] sm:$0xf]
        %v1878 = vunpack.c.l.b16 %v1814
        %v1879 = vunpack.c.l.b16 %v1815
        %v1880 = vunpack.c.l.b16 %v1816
        %v1881 = vunpack.c.l.b16 %v1817
        %v1882 = vunpack.c.l.b16 %v1818
        %v1883 = vunpack.c.l.b16 %v1819
        %v1884 = vunpack.c.l.b16 %v1820
        %v1885 = vunpack.c.l.b16 %v1821
        %v1886 = vunpack.c.l.b16 %v1822
        %v1887 = vunpack.c.l.b16 %v1823
        %v1888 = vunpack.c.l.b16 %v1824
        %v1889 = vunpack.c.l.b16 %v1825
        %v1890 = vunpack.c.l.b16 %v1826
        %v1891 = vunpack.c.l.b16 %v1827
        %v1892 = vunpack.c.l.b16 %v1828
        %v1893 = vunpack.c.l.b16 %v1829
        %v1894 = vunpack.c.l.b16 %v1830
        %v1895 = vunpack.c.l.b16 %v1831
        %v1896 = vunpack.c.l.b16 %v1832
        %v1897 = vunpack.c.l.b16 %v1833
        %v1898 = vunpack.c.l.b16 %v1834
        %v1899 = vunpack.c.l.b16 %v1835
        %v1900 = vunpack.c.l.b16 %v1836
        %v1901 = vunpack.c.l.b16 %v1837
        %v1902 = vunpack.c.l.b16 %v1838
        %v1903 = vunpack.c.l.b16 %v1839
        %v1904 = vunpack.c.l.b16 %v1840
        %v1905 = vunpack.c.l.b16 %v1841
        %v1906 = vunpack.c.l.b16 %v1842
        %v1907 = vunpack.c.l.b16 %v1843
        %v1908 = vunpack.c.l.b16 %v1844
        %v1909 = vunpack.c.l.b16 %v1845
        %v1910 = vpack.c.b16 %v1879, %v1878
        %v1911 = vpack.c.b16 %v1881, %v1880
        %v1912 = vpack.c.b16 %v1883, %v1882
        %v1913 = vpack.c.b16 %v1885, %v1884
        %v1914 = vpack.c.b16 %v1887, %v1886
        %v1915 = vpack.c.b16 %v1889, %v1888
        %v1916 = vpack.c.b16 %v1891, %v1890
        %v1917 = vpack.c.b16 %v1893, %v1892
        %v1918 = vpack.c.b16 %v1895, %v1894
        %v1919 = vpack.c.b16 %v1897, %v1896
        %v1920 = vpack.c.b16 %v1899, %v1898
        %v1921 = vpack.c.b16 %v1901, %v1900
        %v1922 = vpack.c.b16 %v1903, %v1902
        %v1923 = vpack.c.b16 %v1905, %v1904
        %v1924 = vpack.c.b16 %v1907, %v1906
        %v1925 = vpack.c.b16 %v1909, %v1908
        %1942 = vmatprep.subr.bf16.mxu0 0
        %1943 = vmatpush1.bf16.msra.mxu0 %v1910
        %1944 = vmatprep.subr.bf16.mxu0 0
        %1945 = vmatpush1.bf16.msra.mxu0 %v1911
        %1946 = vmatprep.subr.bf16.mxu0 0
        %1947 = vmatpush1.bf16.msra.mxu0 %v1912
        %1948 = vmatprep.subr.bf16.mxu0 0
        %1949 = vmatpush1.bf16.msra.mxu0 %v1913
        %1950 = vmatprep.subr.bf16.mxu0 0
        %1951 = vmatpush1.bf16.msra.mxu0 %v1914
        %1952 = vmatprep.subr.bf16.mxu0 0
        %1953 = vmatpush1.bf16.msra.mxu0 %v1915
        %1954 = vmatprep.subr.bf16.mxu0 0
        %1955 = vmatpush1.bf16.msra.mxu0 %v1916
        %1956 = vmatprep.subr.bf16.mxu0 0
        %1957 = vmatpush1.bf16.msra.mxu0 %v1917
        %1958 = vmatprep.subr.bf16.mxu0 0
        %1959 = vmatpush1.bf16.msra.mxu0 %v1918
        %1960 = vmatprep.subr.bf16.mxu0 0
        %1961 = vmatpush1.bf16.msra.mxu0 %v1919
        %1962 = vmatprep.subr.bf16.mxu0 0
        %1963 = vmatpush1.bf16.msra.mxu0 %v1920
        %1964 = vmatprep.subr.bf16.mxu0 0
        %1965 = vmatpush1.bf16.msra.mxu0 %v1921
        %1966 = vmatprep.subr.bf16.mxu0 0
        %1967 = vmatpush1.bf16.msra.mxu0 %v1922
        %1968 = vmatprep.subr.bf16.mxu0 0
        %1969 = vmatpush1.bf16.msra.mxu0 %v1923
        %1970 = vmatprep.subr.bf16.mxu0 0
        %1971 = vmatpush1.bf16.msra.mxu0 %v1924
        %1972 = vmatprep.subr.bf16.mxu0 0
        %1973 = vmatpush1.bf16.msra.mxu0 %v1925
        %1974 = vmatprep.mubr.bf16.mxu0 %v1813
        %1975 = vmatmul.mubr.bf16.gmra.mrb[0].mxu0 %v1812
        %v1976 = vpop.f32.mrb[0].mxu0
        %v1977 = vadd.f32 0.0, %v1976
        %v1978 = vpop.f32.mrb[0].mxu0
        %v1979 = vpop.f32.mrb[0].mxu0
        %v1980 = vadd.f32 0.0, %v1979
        %v1981 = vpop.f32.mrb[0].mxu0
        %1982 = vdwg.mxu0
        %v1983 = vadd.f32 %v1790, %v1977
        %v1984 = vadd.f32 %v1791, %v1980
        %vm1985 = vcmp.eq.f32.partialorder %v992, 5.0
        %vm1986 = vcmp.eq.f32.partialorder %v993, 5.0
        %vm1987 = vcmp.eq.f32.partialorder %v994, 5.0
        %vm1988 = vcmp.eq.f32.partialorder %v995, 5.0
        %v1989 = vsel %vm1985, %v1016, 0.0
        %v1990 = vsel %vm1986, %v1017, 0.0
        %v1991 = vsel %vm1987, %v1018, 0.0
        %v1992 = vsel %vm1988, %v1019, 0.0
        %vm1993 = vcmp.eq.f32.partialorder %v1008, 5.0
        %vm1994 = vcmp.eq.f32.partialorder %v1009, 5.0
        %vm1995 = vcmp.eq.f32.partialorder %v1010, 5.0
        %vm1996 = vcmp.eq.f32.partialorder %v1011, 5.0
        %v1997 = vsel %vm1993, %v1020, 0.0
        %v1998 = vsel %vm1994, %v1021, 0.0
        %v1999 = vsel %vm1995, %v1022, 0.0
        %v2000 = vsel %vm1996, %v1023, 0.0
        %v2001 = vadd.f32 %v1989, %v1997
        %v2002 = vadd.f32 %v1990, %v1998
        %v2003 = vadd.f32 %v1991, %v1999
        %v2004 = vadd.f32 %v1992, %v2000
        %v2005 = vpack.c.bf16 %v2003, %v2001
        %v2006 = vpack.c.bf16 %v2004, %v2002
        %v2007 = vld [vmem:[#allocation7 + $0x280] sm:$0xf]
        %v2008 = vld [vmem:[#allocation7 + $0x284] sm:$0xf]
        %v2009 = vld [vmem:[#allocation7 + $0x288] sm:$0xf]
        %v2010 = vld [vmem:[#allocation7 + $0x28c] sm:$0xf]
        %v2011 = vld [vmem:[#allocation7 + $0x290] sm:$0xf]
        %v2012 = vld [vmem:[#allocation7 + $0x294] sm:$0xf]
        %v2013 = vld [vmem:[#allocation7 + $0x298] sm:$0xf]
        %v2014 = vld [vmem:[#allocation7 + $0x29c] sm:$0xf]
        %v2015 = vld [vmem:[#allocation7 + $0x2a0] sm:$0xf]
        %v2016 = vld [vmem:[#allocation7 + $0x2a4] sm:$0xf]
        %v2017 = vld [vmem:[#allocation7 + $0x2a8] sm:$0xf]
        %v2018 = vld [vmem:[#allocation7 + $0x2ac] sm:$0xf]
        %v2019 = vld [vmem:[#allocation7 + $0x2b0] sm:$0xf]
        %v2020 = vld [vmem:[#allocation7 + $0x2b4] sm:$0xf]
        %v2021 = vld [vmem:[#allocation7 + $0x2b8] sm:$0xf]
        %v2022 = vld [vmem:[#allocation7 + $0x2bc] sm:$0xf]
        %v2023 = vld [vmem:[#allocation7 + $0x2c0] sm:$0xf]
        %v2024 = vld [vmem:[#allocation7 + $0x2c4] sm:$0xf]
        %v2025 = vld [vmem:[#allocation7 + $0x2c8] sm:$0xf]
        %v2026 = vld [vmem:[#allocation7 + $0x2cc] sm:$0xf]
        %v2027 = vld [vmem:[#allocation7 + $0x2d0] sm:$0xf]
        %v2028 = vld [vmem:[#allocation7 + $0x2d4] sm:$0xf]
        %v2029 = vld [vmem:[#allocation7 + $0x2d8] sm:$0xf]
        %v2030 = vld [vmem:[#allocation7 + $0x2dc] sm:$0xf]
        %v2031 = vld [vmem:[#allocation7 + $0x2e0] sm:$0xf]
        %v2032 = vld [vmem:[#allocation7 + $0x2e4] sm:$0xf]
        %v2033 = vld [vmem:[#allocation7 + $0x2e8] sm:$0xf]
        %v2034 = vld [vmem:[#allocation7 + $0x2ec] sm:$0xf]
        %v2035 = vld [vmem:[#allocation7 + $0x2f0] sm:$0xf]
        %v2036 = vld [vmem:[#allocation7 + $0x2f4] sm:$0xf]
        %v2037 = vld [vmem:[#allocation7 + $0x2f8] sm:$0xf]
        %v2038 = vld [vmem:[#allocation7 + $0x2fc] sm:$0xf]
        %v2071 = vunpack.c.l.b16 %v2007
        %v2072 = vunpack.c.l.b16 %v2008
        %v2073 = vunpack.c.l.b16 %v2009
        %v2074 = vunpack.c.l.b16 %v2010
        %v2075 = vunpack.c.l.b16 %v2011
        %v2076 = vunpack.c.l.b16 %v2012
        %v2077 = vunpack.c.l.b16 %v2013
        %v2078 = vunpack.c.l.b16 %v2014
        %v2079 = vunpack.c.l.b16 %v2015
        %v2080 = vunpack.c.l.b16 %v2016
        %v2081 = vunpack.c.l.b16 %v2017
        %v2082 = vunpack.c.l.b16 %v2018
        %v2083 = vunpack.c.l.b16 %v2019
        %v2084 = vunpack.c.l.b16 %v2020
        %v2085 = vunpack.c.l.b16 %v2021
        %v2086 = vunpack.c.l.b16 %v2022
        %v2087 = vunpack.c.l.b16 %v2023
        %v2088 = vunpack.c.l.b16 %v2024
        %v2089 = vunpack.c.l.b16 %v2025
        %v2090 = vunpack.c.l.b16 %v2026
        %v2091 = vunpack.c.l.b16 %v2027
        %v2092 = vunpack.c.l.b16 %v2028
        %v2093 = vunpack.c.l.b16 %v2029
        %v2094 = vunpack.c.l.b16 %v2030
        %v2095 = vunpack.c.l.b16 %v2031
        %v2096 = vunpack.c.l.b16 %v2032
        %v2097 = vunpack.c.l.b16 %v2033
        %v2098 = vunpack.c.l.b16 %v2034
        %v2099 = vunpack.c.l.b16 %v2035
        %v2100 = vunpack.c.l.b16 %v2036
        %v2101 = vunpack.c.l.b16 %v2037
        %v2102 = vunpack.c.l.b16 %v2038
        %v2103 = vpack.c.b16 %v2072, %v2071
        %v2104 = vpack.c.b16 %v2074, %v2073
        %v2105 = vpack.c.b16 %v2076, %v2075
        %v2106 = vpack.c.b16 %v2078, %v2077
        %v2107 = vpack.c.b16 %v2080, %v2079
        %v2108 = vpack.c.b16 %v2082, %v2081
        %v2109 = vpack.c.b16 %v2084, %v2083
        %v2110 = vpack.c.b16 %v2086, %v2085
        %v2111 = vpack.c.b16 %v2088, %v2087
        %v2112 = vpack.c.b16 %v2090, %v2089
        %v2113 = vpack.c.b16 %v2092, %v2091
        %v2114 = vpack.c.b16 %v2094, %v2093
        %v2115 = vpack.c.b16 %v2096, %v2095
        %v2116 = vpack.c.b16 %v2098, %v2097
        %v2117 = vpack.c.b16 %v2100, %v2099
        %v2118 = vpack.c.b16 %v2102, %v2101
        %2135 = vmatprep.subr.bf16.mxu0 0
        %2136 = vmatpush1.bf16.msra.mxu0 %v2103
        %2137 = vmatprep.subr.bf16.mxu0 0
        %2138 = vmatpush1.bf16.msra.mxu0 %v2104
        %2139 = vmatprep.subr.bf16.mxu0 0
        %2140 = vmatpush1.bf16.msra.mxu0 %v2105
        %2141 = vmatprep.subr.bf16.mxu0 0
        %2142 = vmatpush1.bf16.msra.mxu0 %v2106
        %2143 = vmatprep.subr.bf16.mxu0 0
        %2144 = vmatpush1.bf16.msra.mxu0 %v2107
        %2145 = vmatprep.subr.bf16.mxu0 0
        %2146 = vmatpush1.bf16.msra.mxu0 %v2108
        %2147 = vmatprep.subr.bf16.mxu0 0
        %2148 = vmatpush1.bf16.msra.mxu0 %v2109
        %2149 = vmatprep.subr.bf16.mxu0 0
        %2150 = vmatpush1.bf16.msra.mxu0 %v2110
        %2151 = vmatprep.subr.bf16.mxu0 0
        %2152 = vmatpush1.bf16.msra.mxu0 %v2111
        %2153 = vmatprep.subr.bf16.mxu0 0
        %2154 = vmatpush1.bf16.msra.mxu0 %v2112
        %2155 = vmatprep.subr.bf16.mxu0 0
        %2156 = vmatpush1.bf16.msra.mxu0 %v2113
        %2157 = vmatprep.subr.bf16.mxu0 0
        %2158 = vmatpush1.bf16.msra.mxu0 %v2114
        %2159 = vmatprep.subr.bf16.mxu0 0
        %2160 = vmatpush1.bf16.msra.mxu0 %v2115
        %2161 = vmatprep.subr.bf16.mxu0 0
        %2162 = vmatpush1.bf16.msra.mxu0 %v2116
        %2163 = vmatprep.subr.bf16.mxu0 0
        %2164 = vmatpush1.bf16.msra.mxu0 %v2117
        %2165 = vmatprep.subr.bf16.mxu0 0
        %2166 = vmatpush1.bf16.msra.mxu0 %v2118
        %2167 = vmatprep.mubr.bf16.mxu0 %v2006
        %2168 = vmatmul.mubr.bf16.gmra.mrb[0].mxu0 %v2005
        %v2169 = vpop.f32.mrb[0].mxu0
        %v2170 = vadd.f32 0.0, %v2169
        %v2171 = vpop.f32.mrb[0].mxu0
        %v2172 = vpop.f32.mrb[0].mxu0
        %v2173 = vadd.f32 0.0, %v2172
        %v2174 = vpop.f32.mrb[0].mxu0
        %2175 = vdwg.mxu0
        %v2176 = vadd.f32 %v1983, %v2170
        %v2177 = vadd.f32 %v1984, %v2173
        %vm2178 = vcmp.eq.f32.partialorder %v992, 6.0
        %vm2179 = vcmp.eq.f32.partialorder %v993, 6.0
        %vm2180 = vcmp.eq.f32.partialorder %v994, 6.0
        %vm2181 = vcmp.eq.f32.partialorder %v995, 6.0
        %v2182 = vsel %vm2178, %v1016, 0.0
        %v2183 = vsel %vm2179, %v1017, 0.0
        %v2184 = vsel %vm2180, %v1018, 0.0
        %v2185 = vsel %vm2181, %v1019, 0.0
        %vm2186 = vcmp.eq.f32.partialorder %v1008, 6.0
        %vm2187 = vcmp.eq.f32.partialorder %v1009, 6.0
        %vm2188 = vcmp.eq.f32.partialorder %v1010, 6.0
        %vm2189 = vcmp.eq.f32.partialorder %v1011, 6.0
        %v2190 = vsel %vm2186, %v1020, 0.0
        %v2191 = vsel %vm2187, %v1021, 0.0
        %v2192 = vsel %vm2188, %v1022, 0.0
        %v2193 = vsel %vm2189, %v1023, 0.0
        %v2194 = vadd.f32 %v2182, %v2190
        %v2195 = vadd.f32 %v2183, %v2191
        %v2196 = vadd.f32 %v2184, %v2192
        %v2197 = vadd.f32 %v2185, %v2193
        %v2198 = vpack.c.bf16 %v2196, %v2194
        %v2199 = vpack.c.bf16 %v2197, %v2195
        %v2200 = vld [vmem:[#allocation7 + $0x300] sm:$0xf]
        %v2201 = vld [vmem:[#allocation7 + $0x304] sm:$0xf]
        %v2202 = vld [vmem:[#allocation7 + $0x308] sm:$0xf]
        %v2203 = vld [vmem:[#allocation7 + $0x30c] sm:$0xf]
        %v2204 = vld [vmem:[#allocation7 + $0x310] sm:$0xf]
        %v2205 = vld [vmem:[#allocation7 + $0x314] sm:$0xf]
        %v2206 = vld [vmem:[#allocation7 + $0x318] sm:$0xf]
        %v2207 = vld [vmem:[#allocation7 + $0x31c] sm:$0xf]
        %v2208 = vld [vmem:[#allocation7 + $0x320] sm:$0xf]
        %v2209 = vld [vmem:[#allocation7 + $0x324] sm:$0xf]
        %v2210 = vld [vmem:[#allocation7 + $0x328] sm:$0xf]
        %v2211 = vld [vmem:[#allocation7 + $0x32c] sm:$0xf]
        %v2212 = vld [vmem:[#allocation7 + $0x330] sm:$0xf]
        %v2213 = vld [vmem:[#allocation7 + $0x334] sm:$0xf]
        %v2214 = vld [vmem:[#allocation7 + $0x338] sm:$0xf]
        %v2215 = vld [vmem:[#allocation7 + $0x33c] sm:$0xf]
        %v2216 = vld [vmem:[#allocation7 + $0x340] sm:$0xf]
        %v2217 = vld [vmem:[#allocation7 + $0x344] sm:$0xf]
        %v2218 = vld [vmem:[#allocation7 + $0x348] sm:$0xf]
        %v2219 = vld [vmem:[#allocation7 + $0x34c] sm:$0xf]
        %v2220 = vld [vmem:[#allocation7 + $0x350] sm:$0xf]
        %v2221 = vld [vmem:[#allocation7 + $0x354] sm:$0xf]
        %v2222 = vld [vmem:[#allocation7 + $0x358] sm:$0xf]
        %v2223 = vld [vmem:[#allocation7 + $0x35c] sm:$0xf]
        %v2224 = vld [vmem:[#allocation7 + $0x360] sm:$0xf]
        %v2225 = vld [vmem:[#allocation7 + $0x364] sm:$0xf]
        %v2226 = vld [vmem:[#allocation7 + $0x368] sm:$0xf]
        %v2227 = vld [vmem:[#allocation7 + $0x36c] sm:$0xf]
        %v2228 = vld [vmem:[#allocation7 + $0x370] sm:$0xf]
        %v2229 = vld [vmem:[#allocation7 + $0x374] sm:$0xf]
        %v2230 = vld [vmem:[#allocation7 + $0x378] sm:$0xf]
        %v2231 = vld [vmem:[#allocation7 + $0x37c] sm:$0xf]
        %v2264 = vunpack.c.l.b16 %v2200
        %v2265 = vunpack.c.l.b16 %v2201
        %v2266 = vunpack.c.l.b16 %v2202
        %v2267 = vunpack.c.l.b16 %v2203
        %v2268 = vunpack.c.l.b16 %v2204
        %v2269 = vunpack.c.l.b16 %v2205
        %v2270 = vunpack.c.l.b16 %v2206
        %v2271 = vunpack.c.l.b16 %v2207
        %v2272 = vunpack.c.l.b16 %v2208
        %v2273 = vunpack.c.l.b16 %v2209
        %v2274 = vunpack.c.l.b16 %v2210
        %v2275 = vunpack.c.l.b16 %v2211
        %v2276 = vunpack.c.l.b16 %v2212
        %v2277 = vunpack.c.l.b16 %v2213
        %v2278 = vunpack.c.l.b16 %v2214
        %v2279 = vunpack.c.l.b16 %v2215
        %v2280 = vunpack.c.l.b16 %v2216
        %v2281 = vunpack.c.l.b16 %v2217
        %v2282 = vunpack.c.l.b16 %v2218
        %v2283 = vunpack.c.l.b16 %v2219
        %v2284 = vunpack.c.l.b16 %v2220
        %v2285 = vunpack.c.l.b16 %v2221
        %v2286 = vunpack.c.l.b16 %v2222
        %v2287 = vunpack.c.l.b16 %v2223
        %v2288 = vunpack.c.l.b16 %v2224
        %v2289 = vunpack.c.l.b16 %v2225
        %v2290 = vunpack.c.l.b16 %v2226
        %v2291 = vunpack.c.l.b16 %v2227
        %v2292 = vunpack.c.l.b16 %v2228
        %v2293 = vunpack.c.l.b16 %v2229
        %v2294 = vunpack.c.l.b16 %v2230
        %v2295 = vunpack.c.l.b16 %v2231
        %v2296 = vpack.c.b16 %v2265, %v2264
        %v2297 = vpack.c.b16 %v2267, %v2266
        %v2298 = vpack.c.b16 %v2269, %v2268
        %v2299 = vpack.c.b16 %v2271, %v2270
        %v2300 = vpack.c.b16 %v2273, %v2272
        %v2301 = vpack.c.b16 %v2275, %v2274
        %v2302 = vpack.c.b16 %v2277, %v2276
        %v2303 = vpack.c.b16 %v2279, %v2278
        %v2304 = vpack.c.b16 %v2281, %v2280
        %v2305 = vpack.c.b16 %v2283, %v2282
        %v2306 = vpack.c.b16 %v2285, %v2284
        %v2307 = vpack.c.b16 %v2287, %v2286
        %v2308 = vpack.c.b16 %v2289, %v2288
        %v2309 = vpack.c.b16 %v2291, %v2290
        %v2310 = vpack.c.b16 %v2293, %v2292
        %v2311 = vpack.c.b16 %v2295, %v2294
        %2328 = vmatprep.subr.bf16.mxu0 0
        %2329 = vmatpush1.bf16.msra.mxu0 %v2296
        %2330 = vmatprep.subr.bf16.mxu0 0
        %2331 = vmatpush1.bf16.msra.mxu0 %v2297
        %2332 = vmatprep.subr.bf16.mxu0 0
        %2333 = vmatpush1.bf16.msra.mxu0 %v2298
        %2334 = vmatprep.subr.bf16.mxu0 0
        %2335 = vmatpush1.bf16.msra.mxu0 %v2299
        %2336 = vmatprep.subr.bf16.mxu0 0
        %2337 = vmatpush1.bf16.msra.mxu0 %v2300
        %2338 = vmatprep.subr.bf16.mxu0 0
        %2339 = vmatpush1.bf16.msra.mxu0 %v2301
        %2340 = vmatprep.subr.bf16.mxu0 0
        %2341 = vmatpush1.bf16.msra.mxu0 %v2302
        %2342 = vmatprep.subr.bf16.mxu0 0
        %2343 = vmatpush1.bf16.msra.mxu0 %v2303
        %2344 = vmatprep.subr.bf16.mxu0 0
        %2345 = vmatpush1.bf16.msra.mxu0 %v2304
        %2346 = vmatprep.subr.bf16.mxu0 0
        %2347 = vmatpush1.bf16.msra.mxu0 %v2305
        %2348 = vmatprep.subr.bf16.mxu0 0
        %2349 = vmatpush1.bf16.msra.mxu0 %v2306
        %2350 = vmatprep.subr.bf16.mxu0 0
        %2351 = vmatpush1.bf16.msra.mxu0 %v2307
        %2352 = vmatprep.subr.bf16.mxu0 0
        %2353 = vmatpush1.bf16.msra.mxu0 %v2308
        %2354 = vmatprep.subr.bf16.mxu0 0
        %2355 = vmatpush1.bf16.msra.mxu0 %v2309
        %2356 = vmatprep.subr.bf16.mxu0 0
        %2357 = vmatpush1.bf16.msra.mxu0 %v2310
        %2358 = vmatprep.subr.bf16.mxu0 0
        %2359 = vmatpush1.bf16.msra.mxu0 %v2311
        %2360 = vmatprep.mubr.bf16.mxu0 %v2199
        %2361 = vmatmul.mubr.bf16.gmra.mrb[0].mxu0 %v2198
        %v2362 = vpop.f32.mrb[0].mxu0
        %v2363 = vadd.f32 0.0, %v2362
        %v2364 = vpop.f32.mrb[0].mxu0
        %v2365 = vpop.f32.mrb[0].mxu0
        %v2366 = vadd.f32 0.0, %v2365
        %v2367 = vpop.f32.mrb[0].mxu0
        %2368 = vdwg.mxu0
        %v2369 = vadd.f32 %v2176, %v2363
        %v2370 = vadd.f32 %v2177, %v2366
        %vm2371 = vcmp.eq.f32.partialorder %v992, 7.0
        %vm2372 = vcmp.eq.f32.partialorder %v993, 7.0
        %vm2373 = vcmp.eq.f32.partialorder %v994, 7.0
        %vm2374 = vcmp.eq.f32.partialorder %v995, 7.0
        %v2375 = vsel %vm2371, %v1016, 0.0
        %v2376 = vsel %vm2372, %v1017, 0.0
        %v2377 = vsel %vm2373, %v1018, 0.0
        %v2378 = vsel %vm2374, %v1019, 0.0
        %vm2379 = vcmp.eq.f32.partialorder %v1008, 7.0
        %vm2380 = vcmp.eq.f32.partialorder %v1009, 7.0
        %vm2381 = vcmp.eq.f32.partialorder %v1010, 7.0
        %vm2382 = vcmp.eq.f32.partialorder %v1011, 7.0
        %v2383 = vsel %vm2379, %v1020, 0.0
        %v2384 = vsel %vm2380, %v1021, 0.0
        %v2385 = vsel %vm2381, %v1022, 0.0
        %v2386 = vsel %vm2382, %v1023, 0.0
        %v2387 = vadd.f32 %v2375, %v2383
        %v2388 = vadd.f32 %v2376, %v2384
        %v2389 = vadd.f32 %v2377, %v2385
        %v2390 = vadd.f32 %v2378, %v2386
        %v2391 = vpack.c.bf16 %v2389, %v2387
        %v2392 = vpack.c.bf16 %v2390, %v2388
        %v2393 = vld [vmem:[#allocation7 + $0x380] sm:$0xf]
        %v2394 = vld [vmem:[#allocation7 + $0x384] sm:$0xf]
        %v2395 = vld [vmem:[#allocation7 + $0x388] sm:$0xf]
        %v2396 = vld [vmem:[#allocation7 + $0x38c] sm:$0xf]
        %v2397 = vld [vmem:[#allocation7 + $0x390] sm:$0xf]
        %v2398 = vld [vmem:[#allocation7 + $0x394] sm:$0xf]
        %v2399 = vld [vmem:[#allocation7 + $0x398] sm:$0xf]
        %v2400 = vld [vmem:[#allocation7 + $0x39c] sm:$0xf]
        %v2401 = vld [vmem:[#allocation7 + $0x3a0] sm:$0xf]
        %v2402 = vld [vmem:[#allocation7 + $0x3a4] sm:$0xf]
        %v2403 = vld [vmem:[#allocation7 + $0x3a8] sm:$0xf]
        %v2404 = vld [vmem:[#allocation7 + $0x3ac] sm:$0xf]
        %v2405 = vld [vmem:[#allocation7 + $0x3b0] sm:$0xf]
        %v2406 = vld [vmem:[#allocation7 + $0x3b4] sm:$0xf]
        %v2407 = vld [vmem:[#allocation7 + $0x3b8] sm:$0xf]
        %v2408 = vld [vmem:[#allocation7 + $0x3bc] sm:$0xf]
        %v2409 = vld [vmem:[#allocation7 + $0x3c0] sm:$0xf]
        %v2410 = vld [vmem:[#allocation7 + $0x3c4] sm:$0xf]
        %v2411 = vld [vmem:[#allocation7 + $0x3c8] sm:$0xf]
        %v2412 = vld [vmem:[#allocation7 + $0x3cc] sm:$0xf]
        %v2413 = vld [vmem:[#allocation7 + $0x3d0] sm:$0xf]
        %v2414 = vld [vmem:[#allocation7 + $0x3d4] sm:$0xf]
        %v2415 = vld [vmem:[#allocation7 + $0x3d8] sm:$0xf]
        %v2416 = vld [vmem:[#allocation7 + $0x3dc] sm:$0xf]
        %v2417 = vld [vmem:[#allocation7 + $0x3e0] sm:$0xf]
        %v2418 = vld [vmem:[#allocation7 + $0x3e4] sm:$0xf]
        %v2419 = vld [vmem:[#allocation7 + $0x3e8] sm:$0xf]
        %v2420 = vld [vmem:[#allocation7 + $0x3ec] sm:$0xf]
        %v2421 = vld [vmem:[#allocation7 + $0x3f0] sm:$0xf]
        %v2422 = vld [vmem:[#allocation7 + $0x3f4] sm:$0xf]
        %v2423 = vld [vmem:[#allocation7 + $0x3f8] sm:$0xf]
        %v2424 = vld [vmem:[#allocation7 + $0x3fc] sm:$0xf]
        %v2457 = vunpack.c.l.b16 %v2393
        %v2458 = vunpack.c.l.b16 %v2394
        %v2459 = vunpack.c.l.b16 %v2395
        %v2460 = vunpack.c.l.b16 %v2396
        %v2461 = vunpack.c.l.b16 %v2397
        %v2462 = vunpack.c.l.b16 %v2398
        %v2463 = vunpack.c.l.b16 %v2399
        %v2464 = vunpack.c.l.b16 %v2400
        %v2465 = vunpack.c.l.b16 %v2401
        %v2466 = vunpack.c.l.b16 %v2402
        %v2467 = vunpack.c.l.b16 %v2403
        %v2468 = vunpack.c.l.b16 %v2404
        %v2469 = vunpack.c.l.b16 %v2405
        %v2470 = vunpack.c.l.b16 %v2406
        %v2471 = vunpack.c.l.b16 %v2407
        %v2472 = vunpack.c.l.b16 %v2408
        %v2473 = vunpack.c.l.b16 %v2409
        %v2474 = vunpack.c.l.b16 %v2410
        %v2475 = vunpack.c.l.b16 %v2411
        %v2476 = vunpack.c.l.b16 %v2412
        %v2477 = vunpack.c.l.b16 %v2413
        %v2478 = vunpack.c.l.b16 %v2414
        %v2479 = vunpack.c.l.b16 %v2415
        %v2480 = vunpack.c.l.b16 %v2416
        %v2481 = vunpack.c.l.b16 %v2417
        %v2482 = vunpack.c.l.b16 %v2418
        %v2483 = vunpack.c.l.b16 %v2419
        %v2484 = vunpack.c.l.b16 %v2420
        %v2485 = vunpack.c.l.b16 %v2421
        %v2486 = vunpack.c.l.b16 %v2422
        %v2487 = vunpack.c.l.b16 %v2423
        %v2488 = vunpack.c.l.b16 %v2424
        %v2489 = vpack.c.b16 %v2458, %v2457
        %v2490 = vpack.c.b16 %v2460, %v2459
        %v2491 = vpack.c.b16 %v2462, %v2461
        %v2492 = vpack.c.b16 %v2464, %v2463
        %v2493 = vpack.c.b16 %v2466, %v2465
        %v2494 = vpack.c.b16 %v2468, %v2467
        %v2495 = vpack.c.b16 %v2470, %v2469
        %v2496 = vpack.c.b16 %v2472, %v2471
        %v2497 = vpack.c.b16 %v2474, %v2473
        %v2498 = vpack.c.b16 %v2476, %v2475
        %v2499 = vpack.c.b16 %v2478, %v2477
        %v2500 = vpack.c.b16 %v2480, %v2479
        %v2501 = vpack.c.b16 %v2482, %v2481
        %v2502 = vpack.c.b16 %v2484, %v2483
        %v2503 = vpack.c.b16 %v2486, %v2485
        %v2504 = vpack.c.b16 %v2488, %v2487
        %2521 = vmatprep.subr.bf16.mxu0 0
        %2522 = vmatpush1.bf16.msra.mxu0 %v2489
        %2523 = vmatprep.subr.bf16.mxu0 0
        %2524 = vmatpush1.bf16.msra.mxu0 %v2490
        %2525 = vmatprep.subr.bf16.mxu0 0
        %2526 = vmatpush1.bf16.msra.mxu0 %v2491
        %2527 = vmatprep.subr.bf16.mxu0 0
        %2528 = vmatpush1.bf16.msra.mxu0 %v2492
        %2529 = vmatprep.subr.bf16.mxu0 0
        %2530 = vmatpush1.bf16.msra.mxu0 %v2493
        %2531 = vmatprep.subr.bf16.mxu0 0
        %2532 = vmatpush1.bf16.msra.mxu0 %v2494
        %2533 = vmatprep.subr.bf16.mxu0 0
        %2534 = vmatpush1.bf16.msra.mxu0 %v2495
        %2535 = vmatprep.subr.bf16.mxu0 0
        %2536 = vmatpush1.bf16.msra.mxu0 %v2496
        %2537 = vmatprep.subr.bf16.mxu0 0
        %2538 = vmatpush1.bf16.msra.mxu0 %v2497
        %2539 = vmatprep.subr.bf16.mxu0 0
        %2540 = vmatpush1.bf16.msra.mxu0 %v2498
        %2541 = vmatprep.subr.bf16.mxu0 0
        %2542 = vmatpush1.bf16.msra.mxu0 %v2499
        %2543 = vmatprep.subr.bf16.mxu0 0
        %2544 = vmatpush1.bf16.msra.mxu0 %v2500
        %2545 = vmatprep.subr.bf16.mxu0 0
        %2546 = vmatpush1.bf16.msra.mxu0 %v2501
        %2547 = vmatprep.subr.bf16.mxu0 0
        %2548 = vmatpush1.bf16.msra.mxu0 %v2502
        %2549 = vmatprep.subr.bf16.mxu0 0
        %2550 = vmatpush1.bf16.msra.mxu0 %v2503
        %2551 = vmatprep.subr.bf16.mxu0 0
        %2552 = vmatpush1.bf16.msra.mxu0 %v2504
        %2553 = vmatprep.mubr.bf16.mxu0 %v2392
        %2554 = vmatmul.mubr.bf16.gmra.mrb[0].mxu0 %v2391
        %v2555 = vpop.f32.mrb[0].mxu0
        %v2556 = vadd.f32 0.0, %v2555
        %v2557 = vpop.f32.mrb[0].mxu0
        %v2558 = vpop.f32.mrb[0].mxu0
        %v2559 = vadd.f32 0.0, %v2558
        %v2560 = vpop.f32.mrb[0].mxu0
        %2561 = vdwg.mxu0
        %v2562 = vadd.f32 %v2369, %v2556
        %v2563 = vadd.f32 %v2370, %v2559
        %v2564 = vmul.f32 %v2562, %v2562
        %v2565 = vmul.f32 %v2563, %v2563
        %2566 = vadd.xlane.f32.xlu0 %v2564
        %v2567 = vpop.xlane.xlu0 %2566
        %2568 = vadd.xlane.f32.xlu0 %v2565
        %v2569 = vpop.xlane.xlu0 %2568
        %v2570 = vrsqrt.pop %v2567
        %v2571 = vmul.f32 %v2567, %v2570
        %vm2572 = vcmp.eq.f32.partialorder %v2567, inf
        %v2573 = vsel %vm2572, %v2567, %v2571
        %vm2574 = vcmp.eq.f32.partialorder %v2567, 0.0
        %v2575 = vand.u32 %v2567, 2147483648
        %v2576 = vsel %vm2574, %v2575, %v2573
        %v2577 = vrsqrt.pop %v2569
        %v2578 = vmul.f32 %v2569, %v2577
        %vm2579 = vcmp.eq.f32.partialorder %v2569, inf
        %v2580 = vsel %vm2579, %v2569, %v2578
        %vm2581 = vcmp.eq.f32.partialorder %v2569, 0.0
        %v2582 = vand.u32 %v2569, 2147483648
        %v2583 = vsel %vm2581, %v2582, %v2580
        %v2584 = vmax.f32 %v2576, 1e-12
        %v2585 = vmax.f32 %v2583, 1e-12
        %v2586 = vrcp.pop %v2584
        %v2587 = vmul.f32 %v2562, %v2586
        %v2588 = vrcp.pop %v2585
        %v2589 = vmul.f32 %v2563, %v2588
        %v2590 = vmax.f32 %v2587, 0.0
        %v2591 = vmax.f32 %v2589, 0.0
        %v2592 = vmin.f32 %v2590, 0.2
        %v2593 = vmin.f32 %v2591, 0.2
        %v2594 = vmul.f32 %v2592, %v2592
        %v2595 = vmul.f32 %v2593, %v2593
        %2596 = vadd.xlane.f32.xlu0 %v2594
        %v2597 = vpop.xlane.xlu0 %2596
        %2598 = vadd.xlane.f32.xlu0 %v2595
        %v2599 = vpop.xlane.xlu0 %2598
        %v2600 = vrsqrt.pop %v2597
        %v2601 = vmul.f32 %v2597, %v2600
        %vm2602 = vcmp.eq.f32.partialorder %v2597, inf
        %v2603 = vsel %vm2602, %v2597, %v2601
        %vm2604 = vcmp.eq.f32.partialorder %v2597, 0.0
        %v2605 = vand.u32 %v2597, 2147483648
        %v2606 = vsel %vm2604, %v2605, %v2603
        %v2607 = vrsqrt.pop %v2599
        %v2608 = vmul.f32 %v2599, %v2607
        %vm2609 = vcmp.eq.f32.partialorder %v2599, inf
        %v2610 = vsel %vm2609, %v2599, %v2608
        %vm2611 = vcmp.eq.f32.partialorder %v2599, 0.0
        %v2612 = vand.u32 %v2599, 2147483648
        %v2613 = vsel %vm2611, %v2612, %v2610
        %v2614 = vmax.f32 %v2606, 1e-12
        %v2615 = vmax.f32 %v2613, 1e-12
        %v2616 = vrcp.pop %v2614
        %v2617 = vmul.f32 %v2592, %v2616
        %v2618 = vrcp.pop %v2615
        %v2619 = vmul.f32 %v2593, %v2618
        %v2620 = vand.u32 2147483647, %v2617
        %v2621 = vand.u32 2147483647, %v2619
        %2622 = vadd.xlane.f32.xlu0 %v2620
        %v2623 = vpop.xlane.xlu0 %2622
        %2624 = vadd.xlane.f32.xlu0 %v2621
        %v2625 = vpop.xlane.xlu0 %2624
        %v2626 = vmax.f32 %v2623, 1e-12
        %v2627 = vmax.f32 %v2625, 1e-12
        %v2628 = vrcp.pop %v2626
        %v2629 = vmul.f32 %v2617, %v2628
        %v2630 = vrcp.pop %v2627
        %v2631 = vmul.f32 %v2619, %v2630
        %v2632 = vadd.f32 %v2629, 1e-10
        %v2633 = vadd.f32 %v2631, 1e-10
        %v2634 = vrsqrt.pop %v2632
        %v2635 = vmul.f32 %v2632, %v2634
        %vm2636 = vcmp.eq.f32.partialorder %v2632, inf
        %v2637 = vsel %vm2636, %v2632, %v2635
        %vm2638 = vcmp.eq.f32.partialorder %v2632, 0.0
        %v2639 = vand.u32 %v2632, 2147483648
        %v2640 = vsel %vm2638, %v2639, %v2637
        %v2641 = vrsqrt.pop %v2633
        %v2642 = vmul.f32 %v2633, %v2641
        %vm2643 = vcmp.eq.f32.partialorder %v2633, inf
        %v2644 = vsel %vm2643, %v2633, %v2642
        %vm2645 = vcmp.eq.f32.partialorder %v2633, 0.0
        %v2646 = vand.u32 %v2633, 2147483648
        %v2647 = vsel %vm2645, %v2646, %v2644
        %v2648 = vsub.f32 %v2640, %v2647
        %v2649 = vmul.f32 %v2648, %v2648
        %v2650 = vadd.f32 %v2649, 0.0
        %v2651 = vld [vmem:[#allocation8] sm:$0xff]
        %v2652 = vadd.f32 %v2651, %v2650
        %2653 = vst [vmem:[#allocation8] sm:$0xff] %v2652
        // Predicated region
        $region49: #{tpu_custom_call.1} parent=31 // pred_check
          %p2654 = pneg %p121
        $region50: #{tpu_custom_call.1} parent=31 // pred_check_branch
          %2656 = sbr.rel (%p2654) target = $region52
        $region51: #{tpu_custom_call.1} parent=31 // pred_region
          %s2658 = ssub.s32 128, 128
          %2659 = vsyncadd [#allocation4], %s2658
          %s2660 = smul.addr %s23, 128
          %s2661 = scalar_lea.hbm %s3, %s2660
          %s2663 = sshll.u32 [#allocation8], 4
          %s2664 = int_to_ptr.vmem [resolvable:$true] %s2663
          %2666 = dma.vmem_to_hbm [thread:$0]  %s2664, 128, %s2661, [#allocation4]
        $region52: #{tpu_custom_call.1} parent=31 // pred_fallthru
          _
        // Predicated region
        $region53: #{tpu_custom_call.1} parent=31 // pred_check
          %p2667 = pneg %p121
        $region54: #{tpu_custom_call.1} parent=31 // pred_check_branch
          %2669 = sbr.rel (%p2667) target = $region56
        $region55: #{tpu_custom_call.1} parent=31 // pred_region
          %2670 = dma.done [#allocation4], 128
        $region56: #{tpu_custom_call.1} parent=31 // pred_fallthru
          _
      $region32: #{tpu_custom_call.1} parent=5 // pred_fallthru
        _
      %p2671 = scmp.le.s32.totalorder 2, %s14
      // Predicated region
      $region57: #{tpu_custom_call.1} parent=5 // pred_check
        %p2672 = pneg %p2671
      $region58: #{tpu_custom_call.1} parent=5 // pred_check_branch
        %2674 = sbr.rel (%p2672) target = $region60
      $region59: #{tpu_custom_call.1} parent=5 // pred_region
        %s2675 = ssub.s32 %s14, 2
      $region60: #{tpu_custom_call.1} parent=5 // pred_fallthru
        _
    $region6: #{tpu_custom_call.1} parent=1 // loop_footer
      %s18 = sadd.s32 1, %s14
    $region7: #{tpu_custom_call.1} parent=1 // loop_footer_branch
      %13 = sbr.rel target = $region3
    $region8: #{tpu_custom_call.1} parent=1 // loop_exit
      _
    %2676 = vsyncpa [#allocation3], 1
    %s2677 = scalar_lea.sflag [#allocation3], 1
    %2678 = vsyncpa %s2677, 1
    %2679 = vsyncpa [#allocation6], 1
    %2680 = vsyncpa [#allocation4], 1
    %s2681 = scalar_lea.sflag [#allocation4], 1
    %2682 = vsyncpa %s2681, 1

</llo_original>
